<compile_context>
chip_gen: v7x
topology: tpu7x:2x2x1
jax: 0.10.0
libtpu: 0.0.40
codegen_flags: <defaults>
</compile_context>

<pallas_src>
import jax
import jax.numpy as jnp
from jax import lax
from jax.experimental import pallas as pl
from jax.experimental.pallas import tpu as pltpu


# ----------------------------- in-kernel helpers -----------------------------

def _zero_packed_halo(xp_ref):
    """Zero only the never-overwritten edges of a dx-packed padded scratch:
    the top/bottom H-halo rows plus the left column (dx=0 block) and right column
    (dx=2 block).  Interiors are fully rewritten by the pooled-row scatter before
    they are read, so a full-buffer memset would be pure store-slot waste."""
    nb, hp, w, c3 = xp_ref.shape
    zrow = jnp.zeros((nb, 1, w, c3), jnp.float32)
    xp_ref[:, pl.ds(0, 1), :, :] = zrow
    xp_ref[:, pl.ds(hp - 1, 1), :, :] = zrow
    zcol = jnp.zeros((nb, hp, 1, c3), jnp.float32)
    xp_ref[:, :, pl.ds(0, 1), :] = zcol
    xp_ref[:, :, pl.ds(w - 1, 1), :] = zcol


def _pool_scatter(y4, hbuf, dst_ref, step):
    """2x2 max-pool of y4 = (NB, ch, W, C) conv activations and dx-packed scatter of
    the pooled rows into dst_ref = (NB, Hn+2, Wn, 3*C):
        lanes [C,2C)   <- pooled map                  (dx = 1, centre)
        lanes [0,C)    <- pooled map shifted right    (dx = 0; column 0 stays zero)
        lanes [2C,3C)  <- pooled map shifted left     (dx = 2; last column stays zero)
    so the next conv layer reads one aligned full-width slab per dy tap."""
    nb, ch, w, c = y4.shape
    assert ch % 2 == 0 and w % 2 == 0
    pr, pw = ch // 2, w // 2
    assert pw >= 2

    # H-direction pair max (static pairs) -> one batched store into the pool scratch.
    hmax = jnp.stack([jnp.maximum(y4[:, 2 * p], y4[:, 2 * p + 1]) for p in range(pr)],
                     axis=1)                                          # (NB, ch/2, W, C)
    hbuf[...] = hmax

    # W-direction pair max via stride-2 sublane reads from VMEM scratch.
    pooled = jnp.maximum(hbuf[:, :, pl.ds(0, pw, 2), :],
                         hbuf[:, :, pl.ds(1, pw, 2), :])              # (NB, ch/2, W/2, C)
    # right-shifted variant (pooled columns 1..) built from strided reads rather than
    # an unaligned value slice.
    pooled_r = jnp.maximum(hbuf[:, :, pl.ds(2, pw - 1, 2), :],
                           hbuf[:, :, pl.ds(3, pw - 1, 2), :])        # (NB, ch/2, W/2-1, C)

    r0 = pl.multiple_of(step * pr, pr) + 1                            # +1 = H-halo offset
    dst_ref[:, pl.ds(r0, pr), :, pl.ds(c, c)] = pooled                                   # dx=1
    dst_ref[:, pl.ds(r0, pr), pl.ds(1, pw - 1), pl.ds(0, c)] = pooled[:, :, :pw - 1, :]  # dx=0
    dst_ref[:, pl.ds(r0, pr), pl.ds(0, pw - 1), pl.ds(2 * c, c)] = pooled_r              # dx=2


def _conv_pool_block1(x_ref, w_ref, b_ref, hbuf, dst_ref):
    """Block 1: 3x3 conv as ONE (M, 9*Cin) x (9*Cin, Cout) matmul per row chunk (taps
    im2col-packed into lanes by the wrapper), folded-BN bias + ReLU, 2x2 max-pool and
    dx-packed scatter into dst_ref."""
    nb, h, w, k = x_ref.shape
    cout = w_ref.shape[-1]
    ch = 2 * hbuf.shape[1]
    assert h % ch == 0 and ch % 2 == 0
    m = nb * ch * w
    wk = w_ref[...]                          # (9*Cin, Cout) hoisted out of the chunk loop
    bias = b_ref[...]                        # (1, Cout)

    def body(step, carry):
        h0 = pl.multiple_of(step * ch, ch)
        lhs = x_ref[:, pl.ds(h0, ch), :, :].reshape(m, k)
        y = jnp.maximum(jnp.dot(lhs, wk, preferred_element_type=jnp.float32) + bias, 0.0)
        _pool_scatter(y.reshape(nb, ch, w, cout), hbuf, dst_ref, step)
        return carry

    lax.fori_loop(0, h // ch, body, 0)


def _conv_pool_block_packed(src_ref, w_ref, b_ref, hbuf, dst_ref):
    """Block 2: 3x3 conv as THREE (M, 3*Cin) x (3*Cin, Cout) matmuls per row chunk
    (one per dy; dx already packed into the lanes of src_ref), bias + ReLU,
    2x2 max-pool and dx-packed scatter into dst_ref."""
    nb, hp, w, k3 = src_ref.shape
    h = hp - 2
    cout = w_ref.shape[-1]
    ch = 2 * hbuf.shape[1]
    assert h % ch == 0 and ch % 2 == 0
    m = nb * ch * w
    bias = b_ref[...]

    def body(step, carry):
        h0 = pl.multiple_of(step * ch, ch)
        acc = jnp.zeros((m, cout), jnp.float32)
        for dy in range(3):                   # static; loads stay inside to cap vreg pressure
            lhs = src_ref[:, pl.ds(h0 + dy, ch), :, :].reshape(m, k3)
            acc = acc + jnp.dot(lhs, w_ref[dy], preferred_element_type=jnp.float32)
        y = jnp.maximum(acc + bias, 0.0)
        _pool_scatter(y.reshape(nb, ch, w, cout), hbuf, dst_ref, step)
        return carry

    lax.fori_loop(0, h // ch, body, 0)


# ----------------------------- fused Pallas kernel -----------------------------

def fused_spec_cnn_kernel(x_ref, cw1, cb1, cw2, cb2, cw3, cb3,
                          hw1, hb1, hw2, hb2,
                          o_ref, xp2, xp3, hbuf1, hbuf2):
    nb = x_ref.shape[0]
    co3 = cw3.shape[-1]

    # Zero only the never-overwritten halo edges of the dx-packed activation scratches.
    _zero_packed_halo(xp2)
    _zero_packed_halo(xp3)

    # block 1: conv(Cin->16) + BN + ReLU + maxpool2   (one matmul per row chunk)
    _conv_pool_block1(x_ref, cw1, cb1, hbuf1, xp2)

    # block 2: conv(16->32) + BN + ReLU + maxpool2    (three matmuls per row chunk)
    _conv_pool_block_packed(xp2, cw2, cb2, hbuf2, xp3)

    # block 3: conv(32->64) + BN + ReLU over the whole map in a single chunk, then GAP
    hp3, w3, k3 = xp3.shape[1], xp3.shape[2], xp3.shape[3]
    h3 = hp3 - 2
    m3 = nb * h3 * w3
    acc = jnp.zeros((m3, co3), jnp.float32)
    for dy in range(3):
        lhs = xp3[:, pl.ds(dy, h3), :, :].reshape(m3, k3)
        acc = acc + jnp.dot(lhs, cw3[dy], preferred_element_type=jnp.float32)
    y3 = jnp.maximum(acc + cb3[...], 0.0)                                # (m3, 64)
    feats = jnp.mean(y3.reshape(nb, h3 * w3, co3), axis=1)               # (NB, 64)  GAP

    # head: Linear(64,64) -> ReLU -> Dropout(identity at eval) -> Linear(64,1)
    hid = jnp.maximum(
        jnp.dot(feats, hw1[...], preferred_element_type=jnp.float32) + hb1[...], 0.0)
    # TODO(synk): Dropout(p=0.3) is identity at inference; train-mode RNG masking not implemented.
    logit = jnp.dot(hid, hw2[...], preferred_element_type=jnp.float32) + hb2[...]  # (NB, 128)
    o_ref[...] = logit.reshape(nb, 1, logit.shape[-1])


# ----------------------------- wrapper (glue) -----------------------------

def _const_spec(shape):
    zeros = (0,) * len(shape)
    return pl.BlockSpec(shape, lambda i: zeros)


def _chunk_rows(h, max_rows):
    """Largest even divisor of h that is <= max_rows (conv output rows per chunk)."""
    ch = 2
    for cand in range(2, max_rows + 1, 2):
        if h % cand == 0:
            ch = cand
    return ch


def spec_cnn_forward(x_nchw, params):
    # PyTorch gives NCHW; convert once to NHWC (channels -> lanes) for the TPU kernel.
    x = jnp.transpose(x_nchw, (0, 2, 3, 1)).astype(jnp.float32)
    N, H, W, Cin = x.shape
    assert H % 8 == 0 and W % 8 == 0, "need H, W multiples of 8 (two pools + 8-sublane granule)"

    c1, c2, c3 = params["c1"], params["c2"], params["c3"]
    co1, co2, co3 = c1["w"].shape[-1], c2["w"].shape[-1], c3["w"].shape[-1]

    # ---- host-side layout plumbing (no FLOPs beyond the BN-scale fold) ----
    # layer-1 input: im2col-pack the 3x3 neighbourhood into lanes -> K = 9*Cin.
    xpad = jnp.pad(x, ((0, 0), (1, 1), (1, 1), (0, 0)))
    x_im2col = jnp.concatenate(
        [xpad[:, dy:dy + H, dx:dx + W, :] for dy in range(3) for dx in range(3)],
        axis=-1)                                                         # (N, H, W, 9*Cin)
    # fold eval-mode BN scale into the conv weights; pack taps into the contraction dim.
    w1k = (c1["w"] * c1["scale"][0]).reshape(9 * Cin, co1)               # (27, 16)
    w2k = (c2["w"] * c2["scale"][0]).reshape(3, 3 * co1, co2)            # (3, 48, 32)
    w3k = (c3["w"] * c3["scale"][0]).reshape(3, 3 * co2, co3)            # (3, 96, 64)
    # lane-dense head: pad Linear(64,1) out to 128 lanes (column 0 holds the logit).
    hw2 = jnp.pad(jnp.transpose(params["w2"]), ((0, 0), (0, 127)))       # (64, 128)
    hb2 = jnp.pad(params["b2"], ((0, 0), (0, 127)))                      # (1, 128)

    ch1 = _chunk_rows(H, 4)        # per-step M = 1*ch1*W      = 128 for 32x32
    ch2 = _chunk_rows(H // 2, 8)   # per-step M = 1*ch2*(W/2)  = 128 for 32x32

    out = pl.pallas_call(
        fused_spec_cnn_kernel,
        out_shape=jax.ShapeDtypeStruct((N, 1, 128), jnp.float32),
        grid_spec=pltpu.PrefetchScalarGridSpec(
            num_scalar_prefetch=0,
            grid=(N,),                      # batch over the grid: parallel across TCs on v7x
            in_specs=[
                pl.BlockSpec((1, H, W, 9 * Cin), lambda i: (i, 0, 0, 0)),
                _const_spec((9 * Cin, co1)), _const_spec((1, co1)),
                _const_spec((3, 3 * co1, co2)), _const_spec((1, co2)),
                _const_spec((3, 3 * co2, co3)), _const_spec((1, co3)),
                _const_spec((64, 64)), _const_spec((1, 64)),
                _const_spec((64, 128)), _const_spec((1, 128)),
            ],
            out_specs=pl.BlockSpec((1, 1, 128), lambda i: (i, 0, 0)),
            scratch_shapes=[
                pltpu.VMEM((1, H // 2 + 2, W // 2, 3 * co1), jnp.float32),  # dx-packed act1
                pltpu.VMEM((1, H // 4 + 2, W // 4, 3 * co2), jnp.float32),  # dx-packed act2
                pltpu.VMEM((1, ch1 // 2, W, co1), jnp.float32),             # H-pool buf 1
                pltpu.VMEM((1, ch2 // 2, W // 2, co2), jnp.float32),        # H-pool buf 2
            ],
        ),
        compiler_params=pltpu.CompilerParams(dimension_semantics=("parallel",)),
    )(x_im2col, w1k, c1["bias"], w2k, c2["bias"], w3k, c3["bias"],
      params["w1"], params["b1"], hw2, hb2)
    return out[:, 0, 0]                                                  # .squeeze(-1)


# ----------------------------- parameters -----------------------------

def init_params(key, in_ch=3):
    ks = iter(jax.random.split(key, 22))

    def conv_bn(cin, cout):
        # Conv weights (HWIO) + conv bias + eval-mode BatchNorm folded into scale/bias.
        w = jax.random.normal(next(ks), (3, 3, cin, cout), jnp.float32) / jnp.sqrt(9.0 * cin)
        b_conv = 0.05 * jax.random.normal(next(ks), (cout,), jnp.float32)
        gamma = 1.0 + 0.1 * jax.random.normal(next(ks), (cout,), jnp.float32)
        beta = 0.1 * jax.random.normal(next(ks), (cout,), jnp.float32)
        r_mean = 0.1 * jax.random.normal(next(ks), (cout,), jnp.float32)
        r_var = 1.0 + 0.1 * jnp.abs(jax.random.normal(next(ks), (cout,), jnp.float32))
        # TODO(synk): BatchNorm uses eval-mode running stats; train-mode batch stats not modeled.
        s = gamma / jnp.sqrt(r_var + 1e-5)
        bias = s * (b_conv - r_mean) + beta
        return {"w": w, "scale": s.reshape(1, cout), "bias": bias.reshape(1, cout)}

    return {
        "c1": conv_bn(in_ch, 16),
        "c2": conv_bn(16, 32),
        "c3": conv_bn(32, 64),
        "w1": jax.random.normal(next(ks), (64, 64), jnp.float32) / 8.0,
        "b1": 0.05 * jax.random.normal(next(ks), (1, 64), jnp.float32),
        "w2": jax.random.normal(next(ks), (1, 64), jnp.float32) / 8.0,
        "b2": 0.05 * jax.random.normal(next(ks), (1, 1), jnp.float32),
    }


# ----------------------------- pure-JAX reference -----------------------------

def ref_forward(x_nchw, params):
    x = jnp.transpose(x_nchw, (0, 2, 3, 1)).astype(jnp.float32)

    def conv(x, p):
        N, H, W, _ = x.shape
        xp = jnp.pad(x, ((0, 0), (1, 1), (1, 1), (0, 0)))
        cout = p["w"].shape[-1]
        acc = jnp.zeros((N, H, W, cout), jnp.float32)
        for dy in range(3):
            for dx in range(3):
                acc = acc + jnp.einsum("nhwc,co->nhwo",
                                       xp[:, dy:dy + H, dx:dx + W, :], p["w"][dy, dx],
                                       precision="highest")
        return jnp.maximum(acc * p["scale"][0] + p["bias"][0], 0.0)

    def pool(y):
        N, H, W, C = y.shape
        return jnp.max(y.reshape(N, H // 2, 2, W // 2, 2, C), axis=(2, 4))

    y = pool(conv(x, params["c1"]))
    y = pool(conv(y, params["c2"]))
    y = conv(y, params["c3"])
    feats = jnp.mean(y, axis=(1, 2))
    h = jnp.maximum(jnp.dot(feats, params["w1"], precision="highest") + params["b1"][0], 0.0)
    return jnp.sum(h * params["w2"], axis=1) + params["b2"][0, 0]


# ----------------------------- main -----------------------------

if __name__ == "__main__":
    key = jax.random.PRNGKey(0)
    pkey, xkey = jax.random.split(key)
    params = init_params(pkey, in_ch=3)

    # Small NCHW spectrogram batch: (batch=2, channels=3, H=32, W=32).
    # 32x32 keeps every intermediate spatial dim (32/16/8) a multiple of 8 sublanes.
    x = jax.random.normal(xkey, (2, 3, 32, 32), jnp.float32)

    out = jax.block_until_ready(spec_cnn_forward(x, params))
    ref = ref_forward(x, params)
    assert out.shape == (2,), out.shape
    assert jnp.allclose(out, ref, rtol=2e-3, atol=2e-3), (out, ref)
    print("KERNEL_OK")
</pallas_src>

<mosaic_0001>
module attributes {stable_mosaic.version = 11 : i64} {
  func.func @fused_spec_cnn_kernel(%arg0: i32, %arg1: memref<1x32x32x27xf32, #tpu.memory_space<vmem>>, %arg2: memref<27x16xf32, #tpu.memory_space<vmem>>, %arg3: memref<1x16xf32, #tpu.memory_space<vmem>>, %arg4: memref<3x48x32xf32, #tpu.memory_space<vmem>>, %arg5: memref<1x32xf32, #tpu.memory_space<vmem>>, %arg6: memref<3x96x64xf32, #tpu.memory_space<vmem>>, %arg7: memref<1x64xf32, #tpu.memory_space<vmem>>, %arg8: memref<64x64xf32, #tpu.memory_space<vmem>>, %arg9: memref<1x64xf32, #tpu.memory_space<vmem>>, %arg10: memref<64x128xf32, #tpu.memory_space<vmem>>, %arg11: memref<1x128xf32, #tpu.memory_space<vmem>>, %arg12: memref<1x1x128xf32, #tpu.memory_space<vmem>>, %arg13: memref<1x18x16x48xf32, #tpu.memory_space<vmem>>, %arg14: memref<1x10x8x96xf32, #tpu.memory_space<vmem>>, %arg15: memref<1x2x32x16xf32, #tpu.memory_space<vmem>>, %arg16: memref<1x4x16x32xf32, #tpu.memory_space<vmem>>) attributes {dimension_semantics = [#tpu.dimension_semantics<parallel>], iteration_bounds = array<i64: 2>, scalar_prefetch = 0 : i64, scratch_operands = 4 : i64, tpu.core_type = #tpu.core_type<tc>, window_params = [{transform_indices = @transform_0, window_bounds = array<i64: 1, 32, 32, 27>}, {pipeline_mode = #tpu.pipeline_mode<synchronous>, transform_indices = @transform_1, window_bounds = array<i64: 27, 16>}, {pipeline_mode = #tpu.pipeline_mode<synchronous>, transform_indices = @transform_2, window_bounds = array<i64: 1, 16>}, {pipeline_mode = #tpu.pipeline_mode<synchronous>, transform_indices = @transform_3, window_bounds = array<i64: 3, 48, 32>}, {pipeline_mode = #tpu.pipeline_mode<synchronous>, transform_indices = @transform_4, window_bounds = array<i64: 1, 32>}, {pipeline_mode = #tpu.pipeline_mode<synchronous>, transform_indices = @transform_5, window_bounds = array<i64: 3, 96, 64>}, {pipeline_mode = #tpu.pipeline_mode<synchronous>, transform_indices = @transform_6, window_bounds = array<i64: 1, 64>}, {pipeline_mode = #tpu.pipeline_mode<synchronous>, transform_indices = @transform_7, window_bounds = array<i64: 64, 64>}, {pipeline_mode = #tpu.pipeline_mode<synchronous>, transform_indices = @transform_8, window_bounds = array<i64: 1, 64>}, {pipeline_mode = #tpu.pipeline_mode<synchronous>, transform_indices = @transform_9, window_bounds = array<i64: 64, 128>}, {pipeline_mode = #tpu.pipeline_mode<synchronous>, transform_indices = @transform_10, window_bounds = array<i64: 1, 128>}, {transform_indices = @transform_11, window_bounds = array<i64: 1, 1, 128>}]} {
    %cst = arith.constant 0.000000e+00 : f32
    %0 = vector.broadcast %cst : f32 to vector<1x1x16x48xf32>
    %c0 = arith.constant 0 : index
    %c0_0 = arith.constant 0 : index
    %c0_1 = arith.constant 0 : index
    %c0_2 = arith.constant 0 : index
    %1 = vector.load %arg13[%c0, %c0_0, %c0_1, %c0_2] : memref<1x18x16x48xf32, #tpu.memory_space<vmem>>, vector<1x1x16x48xf32>
    tpu.vector_store %arg13[%c0, %c0_0, %c0_1, %c0_2], %0 {strides = array<i32>} : memref<1x18x16x48xf32, #tpu.memory_space<vmem>>, vector<1x1x16x48xf32>,
    %c0_3 = arith.constant 0 : index
    %c17 = arith.constant 17 : index
    %c0_4 = arith.constant 0 : index
    %c0_5 = arith.constant 0 : index
    %2 = vector.load %arg13[%c0_3, %c17, %c0_4, %c0_5] : memref<1x18x16x48xf32, #tpu.memory_space<vmem>>, vector<1x1x16x48xf32>
    tpu.vector_store %arg13[%c0_3, %c17, %c0_4, %c0_5], %0 {strides = array<i32>} : memref<1x18x16x48xf32, #tpu.memory_space<vmem>>, vector<1x1x16x48xf32>,
    %cst_6 = arith.constant 0.000000e+00 : f32
    %3 = vector.broadcast %cst_6 : f32 to vector<1x18x1x48xf32>
    %c0_7 = arith.constant 0 : index
    %c0_8 = arith.constant 0 : index
    %c0_9 = arith.constant 0 : index
    %c0_10 = arith.constant 0 : index
    %4 = vector.load %arg13[%c0_7, %c0_8, %c0_9, %c0_10] : memref<1x18x16x48xf32, #tpu.memory_space<vmem>>, vector<1x18x1x48xf32>
    tpu.vector_store %arg13[%c0_7, %c0_8, %c0_9, %c0_10], %3 {strides = array<i32>} : memref<1x18x16x48xf32, #tpu.memory_space<vmem>>, vector<1x18x1x48xf32>,
    %c0_11 = arith.constant 0 : index
    %c0_12 = arith.constant 0 : index
    %c15 = arith.constant 15 : index
    %c0_13 = arith.constant 0 : index
    %5 = vector.load %arg13[%c0_11, %c0_12, %c15, %c0_13] : memref<1x18x16x48xf32, #tpu.memory_space<vmem>>, vector<1x18x1x48xf32>
    tpu.vector_store %arg13[%c0_11, %c0_12, %c15, %c0_13], %3 {strides = array<i32>} : memref<1x18x16x48xf32, #tpu.memory_space<vmem>>, vector<1x18x1x48xf32>,
    %cst_14 = arith.constant 0.000000e+00 : f32
    %6 = vector.broadcast %cst_14 : f32 to vector<1x1x8x96xf32>
    %c0_15 = arith.constant 0 : index
    %c0_16 = arith.constant 0 : index
    %c0_17 = arith.constant 0 : index
    %c0_18 = arith.constant 0 : index
    %7 = vector.load %arg14[%c0_15, %c0_16, %c0_17, %c0_18] : memref<1x10x8x96xf32, #tpu.memory_space<vmem>>, vector<1x1x8x96xf32>
    tpu.vector_store %arg14[%c0_15, %c0_16, %c0_17, %c0_18], %6 {strides = array<i32>} : memref<1x10x8x96xf32, #tpu.memory_space<vmem>>, vector<1x1x8x96xf32>,
    %c0_19 = arith.constant 0 : index
    %c9 = arith.constant 9 : index
    %c0_20 = arith.constant 0 : index
    %c0_21 = arith.constant 0 : index
    %8 = vector.load %arg14[%c0_19, %c9, %c0_20, %c0_21] : memref<1x10x8x96xf32, #tpu.memory_space<vmem>>, vector<1x1x8x96xf32>
    tpu.vector_store %arg14[%c0_19, %c9, %c0_20, %c0_21], %6 {strides = array<i32>} : memref<1x10x8x96xf32, #tpu.memory_space<vmem>>, vector<1x1x8x96xf32>,
    %cst_22 = arith.constant 0.000000e+00 : f32
    %9 = vector.broadcast %cst_22 : f32 to vector<1x10x1x96xf32>
    %c0_23 = arith.constant 0 : index
    %c0_24 = arith.constant 0 : index
    %c0_25 = arith.constant 0 : index
    %c0_26 = arith.constant 0 : index
    %10 = vector.load %arg14[%c0_23, %c0_24, %c0_25, %c0_26] : memref<1x10x8x96xf32, #tpu.memory_space<vmem>>, vector<1x10x1x96xf32>
    tpu.vector_store %arg14[%c0_23, %c0_24, %c0_25, %c0_26], %9 {strides = array<i32>} : memref<1x10x8x96xf32, #tpu.memory_space<vmem>>, vector<1x10x1x96xf32>,
    %c0_27 = arith.constant 0 : index
    %c0_28 = arith.constant 0 : index
    %c7 = arith.constant 7 : index
    %c0_29 = arith.constant 0 : index
    %11 = vector.load %arg14[%c0_27, %c0_28, %c7, %c0_29] : memref<1x10x8x96xf32, #tpu.memory_space<vmem>>, vector<1x10x1x96xf32>
    tpu.vector_store %arg14[%c0_27, %c0_28, %c7, %c0_29], %9 {strides = array<i32>} : memref<1x10x8x96xf32, #tpu.memory_space<vmem>>, vector<1x10x1x96xf32>,
    %c0_30 = arith.constant 0 : index
    %c0_31 = arith.constant 0 : index
    %12 = vector.load %arg2[%c0_30, %c0_31] : memref<27x16xf32, #tpu.memory_space<vmem>>, vector<27x16xf32>
    %c0_32 = arith.constant 0 : index
    %c0_33 = arith.constant 0 : index
    %13 = vector.load %arg3[%c0_32, %c0_33] : memref<1x16xf32, #tpu.memory_space<vmem>>, vector<1x16xf32>
    %c0_i32 = arith.constant 0 : i32
    %c8_i32 = arith.constant 8 : i32
    %14 = arith.addi %c0_i32, %c8_i32 : i32
    %c1_i32 = arith.constant 1 : i32
    scf.for %arg17 = %c0_i32 to %14 step %c1_i32  : i32 {
      %c4_i32 = arith.constant 4 : i32
      %57 = arith.muli %arg17, %c4_i32 : i32
      %58 = tpu.assume_multiple %57, 4 : i32
      %c0_82 = arith.constant 0 : index
      %59 = arith.index_cast %58 : i32 to index
      %c0_83 = arith.constant 0 : index
      %c0_84 = arith.constant 0 : index
      %60 = vector.load %arg1[%c0_82, %59, %c0_83, %c0_84] : memref<1x32x32x27xf32, #tpu.memory_space<vmem>>, vector<1x4x32x27xf32>
      %61 = vector.shape_cast %60 : vector<1x4x32x27xf32> to vector<128x27xf32>
      %cst_85 = arith.constant dense<0.000000e+00> : vector<128x16xf32>
      %62 = tpu.matmul %61, %12, %cst_85 {dimension_numbers = #tpu.dot_dimension_numbers<[1], [0], [0], [1], [0, 0, 1, 1], [], []>} : vector<128x27xf32>, vector<27x16xf32>, vector<128x16xf32> -> vector<128x16xf32>
      %63 = vector.broadcast %13 : vector<1x16xf32> to vector<128x16xf32>
      %64 = arith.addf %62, %63 : vector<128x16xf32>
      %cst_86 = arith.constant 0.000000e+00 : f32
      %65 = vector.broadcast %cst_86 : f32 to vector<128x16xf32>
      %66 = arith.maximumf %64, %65 : vector<128x16xf32>
      %67 = vector.shape_cast %66 : vector<128x16xf32> to vector<1x4x32x16xf32>
      %68 = vector.extract_strided_slice %67 {offsets = [0, 0, 0, 0], sizes = [1, 1, 32, 16], strides = [1, 1, 1, 1]} : vector<1x4x32x16xf32> to vector<1x1x32x16xf32>
      %69 = vector.shape_cast %68 : vector<1x1x32x16xf32> to vector<1x32x16xf32>
      %70 = vector.extract_strided_slice %67 {offsets = [0, 1, 0, 0], sizes = [1, 1, 32, 16], strides = [1, 1, 1, 1]} : vector<1x4x32x16xf32> to vector<1x1x32x16xf32>
      %71 = vector.shape_cast %70 : vector<1x1x32x16xf32> to vector<1x32x16xf32>
      %72 = arith.maximumf %69, %71 : vector<1x32x16xf32>
      %73 = vector.extract_strided_slice %67 {offsets = [0, 2, 0, 0], sizes = [1, 1, 32, 16], strides = [1, 1, 1, 1]} : vector<1x4x32x16xf32> to vector<1x1x32x16xf32>
      %74 = vector.shape_cast %73 : vector<1x1x32x16xf32> to vector<1x32x16xf32>
      %75 = vector.extract_strided_slice %67 {offsets = [0, 3, 0, 0], sizes = [1, 1, 32, 16], strides = [1, 1, 1, 1]} : vector<1x4x32x16xf32> to vector<1x1x32x16xf32>
      %76 = vector.shape_cast %75 : vector<1x1x32x16xf32> to vector<1x32x16xf32>
      %77 = arith.maximumf %74, %76 : vector<1x32x16xf32>
      %78 = vector.shape_cast %72 : vector<1x32x16xf32> to vector<1x1x32x16xf32>
      %79 = vector.shape_cast %77 : vector<1x32x16xf32> to vector<1x1x32x16xf32>
      %80 = tpu.concatenate %78, %79 in 1 : vector<1x1x32x16xf32>, vector<1x1x32x16xf32> -> vector<1x2x32x16xf32>
      %c0_87 = arith.constant 0 : index
      %c0_88 = arith.constant 0 : index
      %c0_89 = arith.constant 0 : index
      %c0_90 = arith.constant 0 : index
      %81 = vector.load %arg15[%c0_87, %c0_88, %c0_89, %c0_90] : memref<1x2x32x16xf32, #tpu.memory_space<vmem>>, vector<1x2x32x16xf32>
      tpu.vector_store %arg15[%c0_87, %c0_88, %c0_89, %c0_90], %80 {strides = array<i32>} : memref<1x2x32x16xf32, #tpu.memory_space<vmem>>, vector<1x2x32x16xf32>,
      %c0_91 = arith.constant 0 : index
      %c0_92 = arith.constant 0 : index
      %c0_93 = arith.constant 0 : index
      %c0_94 = arith.constant 0 : index
      %82 = tpu.strided_load %arg15[%c0_91, %c0_92, %c0_93, %c0_94] {strides = array<i32: 1, 1, 2, 1>} : memref<1x2x32x16xf32, #tpu.memory_space<vmem>>, vector<1x2x16x16xf32>
      %c0_95 = arith.constant 0 : index
      %c0_96 = arith.constant 0 : index
      %c1_97 = arith.constant 1 : index
      %c0_98 = arith.constant 0 : index
      %83 = tpu.strided_load %arg15[%c0_95, %c0_96, %c1_97, %c0_98] {strides = array<i32: 1, 1, 2, 1>} : memref<1x2x32x16xf32, #tpu.memory_space<vmem>>, vector<1x2x16x16xf32>
      %84 = arith.maximumf %82, %83 : vector<1x2x16x16xf32>
      %c0_99 = arith.constant 0 : index
      %c0_100 = arith.constant 0 : index
      %c2_101 = arith.constant 2 : index
      %c0_102 = arith.constant 0 : index
      %85 = tpu.strided_load %arg15[%c0_99, %c0_100, %c2_101, %c0_102] {strides = array<i32: 1, 1, 2, 1>} : memref<1x2x32x16xf32, #tpu.memory_space<vmem>>, vector<1x2x15x16xf32>
      %c0_103 = arith.constant 0 : index
      %c0_104 = arith.constant 0 : index
      %c3 = arith.constant 3 : index
      %c0_105 = arith.constant 0 : index
      %86 = tpu.strided_load %arg15[%c0_103, %c0_104, %c3, %c0_105] {strides = array<i32: 1, 1, 2, 1>} : memref<1x2x32x16xf32, #tpu.memory_space<vmem>>, vector<1x2x15x16xf32>
      %87 = arith.maximumf %85, %86 : vector<1x2x15x16xf32>
      %c2_i32_106 = arith.constant 2 : i32
      %88 = arith.muli %arg17, %c2_i32_106 : i32
      %89 = tpu.assume_multiple %88, 2 : i32
      %c1_i32_107 = arith.constant 1 : i32
      %90 = arith.addi %89, %c1_i32_107 : i32
      %c0_108 = arith.constant 0 : index
      %91 = arith.index_cast %90 : i32 to index
      %c0_109 = arith.constant 0 : index
      %c16 = arith.constant 16 : index
      %92 = vector.load %arg13[%c0_108, %91, %c0_109, %c16] : memref<1x18x16x48xf32, #tpu.memory_space<vmem>>, vector<1x2x16x16xf32>
      tpu.vector_store %arg13[%c0_108, %91, %c0_109, %c16], %84 {strides = array<i32>} : memref<1x18x16x48xf32, #tpu.memory_space<vmem>>, vector<1x2x16x16xf32>,
      %93 = vector.extract_strided_slice %84 {offsets = [0, 0, 0, 0], sizes = [1, 2, 15, 16], strides = [1, 1, 1, 1]} : vector<1x2x16x16xf32> to vector<1x2x15x16xf32>
      %c0_110 = arith.constant 0 : index
      %94 = arith.index_cast %90 : i32 to index
      %c1_111 = arith.constant 1 : index
      %c0_112 = arith.constant 0 : index
      %95 = vector.load %arg13[%c0_110, %94, %c1_111, %c0_112] : memref<1x18x16x48xf32, #tpu.memory_space<vmem>>, vector<1x2x15x16xf32>
      tpu.vector_store %arg13[%c0_110, %94, %c1_111, %c0_112], %93 {strides = array<i32>} : memref<1x18x16x48xf32, #tpu.memory_space<vmem>>, vector<1x2x15x16xf32>,
      %c0_113 = arith.constant 0 : index
      %96 = arith.index_cast %90 : i32 to index
      %c0_114 = arith.constant 0 : index
      %c32 = arith.constant 32 : index
      %97 = vector.load %arg13[%c0_113, %96, %c0_114, %c32] : memref<1x18x16x48xf32, #tpu.memory_space<vmem>>, vector<1x2x15x16xf32>
      tpu.vector_store %arg13[%c0_113, %96, %c0_114, %c32], %87 {strides = array<i32>} : memref<1x18x16x48xf32, #tpu.memory_space<vmem>>, vector<1x2x15x16xf32>,
    }
    %c8_i32_34 = arith.constant 8 : i32
    %c0_35 = arith.constant 0 : index
    %c0_36 = arith.constant 0 : index
    %15 = vector.load %arg5[%c0_35, %c0_36] : memref<1x32xf32, #tpu.memory_space<vmem>>, vector<1x32xf32>
    %c0_i32_37 = arith.constant 0 : i32
    %c2_i32 = arith.constant 2 : i32
    %16 = arith.addi %c0_i32_37, %c2_i32 : i32
    %c1_i32_38 = arith.constant 1 : i32
    scf.for %arg17 = %c0_i32_37 to %16 step %c1_i32_38  : i32 {
      %c8_i32_82 = arith.constant 8 : i32
      %57 = arith.muli %arg17, %c8_i32_82 : i32
      %58 = tpu.assume_multiple %57, 8 : i32
      %cst_83 = arith.constant 0.000000e+00 : f32
      %59 = vector.broadcast %cst_83 : f32 to vector<128x32xf32>
      %c0_i32_84 = arith.constant 0 : i32
      %60 = arith.addi %58, %c0_i32_84 : i32
      %c0_85 = arith.constant 0 : index
      %61 = arith.index_cast %60 : i32 to index
      %c0_86 = arith.constant 0 : index
      %c0_87 = arith.constant 0 : index
      %62 = vector.load %arg13[%c0_85, %61, %c0_86, %c0_87] : memref<1x18x16x48xf32, #tpu.memory_space<vmem>>, vector<1x8x16x48xf32>
      %63 = vector.shape_cast %62 : vector<1x8x16x48xf32> to vector<128x48xf32>
      %c0_88 = arith.constant 0 : index
      %c0_89 = arith.constant 0 : index
      %c0_90 = arith.constant 0 : index
      %64 = vector.load %arg4[%c0_88, %c0_89, %c0_90] : memref<3x48x32xf32, #tpu.memory_space<vmem>>, vector<1x48x32xf32>
      %65 = vector.shape_cast %64 : vector<1x48x32xf32> to vector<48x32xf32>
      %cst_91 = arith.constant dense<0.000000e+00> : vector<128x32xf32>
      %66 = tpu.matmul %63, %65, %cst_91 {dimension_numbers = #tpu.dot_dimension_numbers<[1], [0], [0], [1], [0, 0, 1, 1], [], []>} : vector<128x48xf32>, vector<48x32xf32>, vector<128x32xf32> -> vector<128x32xf32>
      %67 = arith.addf %59, %66 : vector<128x32xf32>
      %c1_i32_92 = arith.constant 1 : i32
      %68 = arith.addi %58, %c1_i32_92 : i32
      %c0_93 = arith.constant 0 : index
      %69 = arith.index_cast %68 : i32 to index
      %c0_94 = arith.constant 0 : index
      %c0_95 = arith.constant 0 : index
      %70 = vector.load %arg13[%c0_93, %69, %c0_94, %c0_95] : memref<1x18x16x48xf32, #tpu.memory_space<vmem>>, vector<1x8x16x48xf32>
      %71 = vector.shape_cast %70 : vector<1x8x16x48xf32> to vector<128x48xf32>
      %c1_96 = arith.constant 1 : index
      %c0_97 = arith.constant 0 : index
      %c0_98 = arith.constant 0 : index
      %72 = vector.load %arg4[%c1_96, %c0_97, %c0_98] : memref<3x48x32xf32, #tpu.memory_space<vmem>>, vector<1x48x32xf32>
      %73 = vector.shape_cast %72 : vector<1x48x32xf32> to vector<48x32xf32>
      %cst_99 = arith.constant dense<0.000000e+00> : vector<128x32xf32>
      %74 = tpu.matmul %71, %73, %cst_99 {dimension_numbers = #tpu.dot_dimension_numbers<[1], [0], [0], [1], [0, 0, 1, 1], [], []>} : vector<128x48xf32>, vector<48x32xf32>, vector<128x32xf32> -> vector<128x32xf32>
      %75 = arith.addf %67, %74 : vector<128x32xf32>
      %c2_i32_100 = arith.constant 2 : i32
      %76 = arith.addi %58, %c2_i32_100 : i32
      %c0_101 = arith.constant 0 : index
      %77 = arith.index_cast %76 : i32 to index
      %c0_102 = arith.constant 0 : index
      %c0_103 = arith.constant 0 : index
      %78 = vector.load %arg13[%c0_101, %77, %c0_102, %c0_103] : memref<1x18x16x48xf32, #tpu.memory_space<vmem>>, vector<1x8x16x48xf32>
      %79 = vector.shape_cast %78 : vector<1x8x16x48xf32> to vector<128x48xf32>
      %c2_104 = arith.constant 2 : index
      %c0_105 = arith.constant 0 : index
      %c0_106 = arith.constant 0 : index
      %80 = vector.load %arg4[%c2_104, %c0_105, %c0_106] : memref<3x48x32xf32, #tpu.memory_space<vmem>>, vector<1x48x32xf32>
      %81 = vector.shape_cast %80 : vector<1x48x32xf32> to vector<48x32xf32>
      %cst_107 = arith.constant dense<0.000000e+00> : vector<128x32xf32>
      %82 = tpu.matmul %79, %81, %cst_107 {dimension_numbers = #tpu.dot_dimension_numbers<[1], [0], [0], [1], [0, 0, 1, 1], [], []>} : vector<128x48xf32>, vector<48x32xf32>, vector<128x32xf32> -> vector<128x32xf32>
      %83 = arith.addf %75, %82 : vector<128x32xf32>
      %84 = vector.broadcast %15 : vector<1x32xf32> to vector<128x32xf32>
      %85 = arith.addf %83, %84 : vector<128x32xf32>
      %cst_108 = arith.constant 0.000000e+00 : f32
      %86 = vector.broadcast %cst_108 : f32 to vector<128x32xf32>
      %87 = arith.maximumf %85, %86 : vector<128x32xf32>
      %88 = vector.shape_cast %87 : vector<128x32xf32> to vector<1x8x16x32xf32>
      %89 = vector.extract_strided_slice %88 {offsets = [0, 0, 0, 0], sizes = [1, 1, 16, 32], strides = [1, 1, 1, 1]} : vector<1x8x16x32xf32> to vector<1x1x16x32xf32>
      %90 = vector.shape_cast %89 : vector<1x1x16x32xf32> to vector<1x16x32xf32>
      %91 = vector.extract_strided_slice %88 {offsets = [0, 1, 0, 0], sizes = [1, 1, 16, 32], strides = [1, 1, 1, 1]} : vector<1x8x16x32xf32> to vector<1x1x16x32xf32>
      %92 = vector.shape_cast %91 : vector<1x1x16x32xf32> to vector<1x16x32xf32>
      %93 = arith.maximumf %90, %92 : vector<1x16x32xf32>
      %94 = vector.extract_strided_slice %88 {offsets = [0, 2, 0, 0], sizes = [1, 1, 16, 32], strides = [1, 1, 1, 1]} : vector<1x8x16x32xf32> to vector<1x1x16x32xf32>
      %95 = vector.shape_cast %94 : vector<1x1x16x32xf32> to vector<1x16x32xf32>
      %96 = vector.extract_strided_slice %88 {offsets = [0, 3, 0, 0], sizes = [1, 1, 16, 32], strides = [1, 1, 1, 1]} : vector<1x8x16x32xf32> to vector<1x1x16x32xf32>
      %97 = vector.shape_cast %96 : vector<1x1x16x32xf32> to vector<1x16x32xf32>
      %98 = arith.maximumf %95, %97 : vector<1x16x32xf32>
      %99 = vector.extract_strided_slice %88 {offsets = [0, 4, 0, 0], sizes = [1, 1, 16, 32], strides = [1, 1, 1, 1]} : vector<1x8x16x32xf32> to vector<1x1x16x32xf32>
      %100 = vector.shape_cast %99 : vector<1x1x16x32xf32> to vector<1x16x32xf32>
      %101 = vector.extract_strided_slice %88 {offsets = [0, 5, 0, 0], sizes = [1, 1, 16, 32], strides = [1, 1, 1, 1]} : vector<1x8x16x32xf32> to vector<1x1x16x32xf32>
      %102 = vector.shape_cast %101 : vector<1x1x16x32xf32> to vector<1x16x32xf32>
      %103 = arith.maximumf %100, %102 : vector<1x16x32xf32>
      %104 = vector.extract_strided_slice %88 {offsets = [0, 6, 0, 0], sizes = [1, 1, 16, 32], strides = [1, 1, 1, 1]} : vector<1x8x16x32xf32> to vector<1x1x16x32xf32>
      %105 = vector.shape_cast %104 : vector<1x1x16x32xf32> to vector<1x16x32xf32>
      %106 = vector.extract_strided_slice %88 {offsets = [0, 7, 0, 0], sizes = [1, 1, 16, 32], strides = [1, 1, 1, 1]} : vector<1x8x16x32xf32> to vector<1x1x16x32xf32>
      %107 = vector.shape_cast %106 : vector<1x1x16x32xf32> to vector<1x16x32xf32>
      %108 = arith.maximumf %105, %107 : vector<1x16x32xf32>
      %109 = vector.shape_cast %93 : vector<1x16x32xf32> to vector<1x1x16x32xf32>
      %110 = vector.shape_cast %98 : vector<1x16x32xf32> to vector<1x1x16x32xf32>
      %111 = vector.shape_cast %103 : vector<1x16x32xf32> to vector<1x1x16x32xf32>
      %112 = vector.shape_cast %108 : vector<1x16x32xf32> to vector<1x1x16x32xf32>
      %113 = tpu.concatenate %109, %110, %111, %112 in 1 : vector<1x1x16x32xf32>, vector<1x1x16x32xf32>, vector<1x1x16x32xf32>, vector<1x1x16x32xf32> -> vector<1x4x16x32xf32>
      %c0_109 = arith.constant 0 : index
      %c0_110 = arith.constant 0 : index
      %c0_111 = arith.constant 0 : index
      %c0_112 = arith.constant 0 : index
      %114 = vector.load %arg16[%c0_109, %c0_110, %c0_111, %c0_112] : memref<1x4x16x32xf32, #tpu.memory_space<vmem>>, vector<1x4x16x32xf32>
      tpu.vector_store %arg16[%c0_109, %c0_110, %c0_111, %c0_112], %113 {strides = array<i32>} : memref<1x4x16x32xf32, #tpu.memory_space<vmem>>, vector<1x4x16x32xf32>,
      %c0_113 = arith.constant 0 : index
      %c0_114 = arith.constant 0 : index
      %c0_115 = arith.constant 0 : index
      %c0_116 = arith.constant 0 : index
      %115 = tpu.strided_load %arg16[%c0_113, %c0_114, %c0_115, %c0_116] {strides = array<i32: 1, 1, 2, 1>} : memref<1x4x16x32xf32, #tpu.memory_space<vmem>>, vector<1x4x8x32xf32>
      %c0_117 = arith.constant 0 : index
      %c0_118 = arith.constant 0 : index
      %c1_119 = arith.constant 1 : index
      %c0_120 = arith.constant 0 : index
      %116 = tpu.strided_load %arg16[%c0_117, %c0_118, %c1_119, %c0_120] {strides = array<i32: 1, 1, 2, 1>} : memref<1x4x16x32xf32, #tpu.memory_space<vmem>>, vector<1x4x8x32xf32>
      %117 = arith.maximumf %115, %116 : vector<1x4x8x32xf32>
      %c0_121 = arith.constant 0 : index
      %c0_122 = arith.constant 0 : index
      %c2_123 = arith.constant 2 : index
      %c0_124 = arith.constant 0 : index
      %118 = tpu.strided_load %arg16[%c0_121, %c0_122, %c2_123, %c0_124] {strides = array<i32: 1, 1, 2, 1>} : memref<1x4x16x32xf32, #tpu.memory_space<vmem>>, vector<1x4x7x32xf32>
      %c0_125 = arith.constant 0 : index
      %c0_126 = arith.constant 0 : index
      %c3 = arith.constant 3 : index
      %c0_127 = arith.constant 0 : index
      %119 = tpu.strided_load %arg16[%c0_125, %c0_126, %c3, %c0_127] {strides = array<i32: 1, 1, 2, 1>} : memref<1x4x16x32xf32, #tpu.memory_space<vmem>>, vector<1x4x7x32xf32>
      %120 = arith.maximumf %118, %119 : vector<1x4x7x32xf32>
      %c4_i32 = arith.constant 4 : i32
      %121 = arith.muli %arg17, %c4_i32 : i32
      %122 = tpu.assume_multiple %121, 4 : i32
      %c1_i32_128 = arith.constant 1 : i32
      %123 = arith.addi %122, %c1_i32_128 : i32
      %c0_129 = arith.constant 0 : index
      %124 = arith.index_cast %123 : i32 to index
      %c0_130 = arith.constant 0 : index
      %c32 = arith.constant 32 : index
      %125 = vector.load %arg14[%c0_129, %124, %c0_130, %c32] : memref<1x10x8x96xf32, #tpu.memory_space<vmem>>, vector<1x4x8x32xf32>
      tpu.vector_store %arg14[%c0_129, %124, %c0_130, %c32], %117 {strides = array<i32>} : memref<1x10x8x96xf32, #tpu.memory_space<vmem>>, vector<1x4x8x32xf32>,
      %126 = vector.extract_strided_slice %117 {offsets = [0, 0, 0, 0], sizes = [1, 4, 7, 32], strides = [1, 1, 1, 1]} : vector<1x4x8x32xf32> to vector<1x4x7x32xf32>
      %c0_131 = arith.constant 0 : index
      %127 = arith.index_cast %123 : i32 to index
      %c1_132 = arith.constant 1 : index
      %c0_133 = arith.constant 0 : index
      %128 = vector.load %arg14[%c0_131, %127, %c1_132, %c0_133] : memref<1x10x8x96xf32, #tpu.memory_space<vmem>>, vector<1x4x7x32xf32>
      tpu.vector_store %arg14[%c0_131, %127, %c1_132, %c0_133], %126 {strides = array<i32>} : memref<1x10x8x96xf32, #tpu.memory_space<vmem>>, vector<1x4x7x32xf32>,
      %c0_134 = arith.constant 0 : index
      %129 = arith.index_cast %123 : i32 to index
      %c0_135 = arith.constant 0 : index
      %c64 = arith.constant 64 : index
      %130 = vector.load %arg14[%c0_134, %129, %c0_135, %c64] : memref<1x10x8x96xf32, #tpu.memory_space<vmem>>, vector<1x4x7x32xf32>
      tpu.vector_store %arg14[%c0_134, %129, %c0_135, %c64], %120 {strides = array<i32>} : memref<1x10x8x96xf32, #tpu.memory_space<vmem>>, vector<1x4x7x32xf32>,
    }
    %c2_i32_39 = arith.constant 2 : i32
    %cst_40 = arith.constant 0.000000e+00 : f32
    %17 = vector.broadcast %cst_40 : f32 to vector<64x64xf32>
    %c0_41 = arith.constant 0 : index
    %c0_42 = arith.constant 0 : index
    %c0_43 = arith.constant 0 : index
    %c0_44 = arith.constant 0 : index
    %18 = vector.load %arg14[%c0_41, %c0_42, %c0_43, %c0_44] : memref<1x10x8x96xf32, #tpu.memory_space<vmem>>, vector<1x8x8x96xf32>
    %19 = vector.shape_cast %18 : vector<1x8x8x96xf32> to vector<64x96xf32>
    %c0_45 = arith.constant 0 : index
    %c0_46 = arith.constant 0 : index
    %c0_47 = arith.constant 0 : index
    %20 = vector.load %arg6[%c0_45, %c0_46, %c0_47] : memref<3x96x64xf32, #tpu.memory_space<vmem>>, vector<1x96x64xf32>
    %21 = vector.shape_cast %20 : vector<1x96x64xf32> to vector<96x64xf32>
    %cst_48 = arith.constant dense<0.000000e+00> : vector<64x64xf32>
    %22 = tpu.matmul %19, %21, %cst_48 {dimension_numbers = #tpu.dot_dimension_numbers<[1], [0], [0], [1], [0, 0, 1, 1], [], []>} : vector<64x96xf32>, vector<96x64xf32>, vector<64x64xf32> -> vector<64x64xf32>
    %23 = arith.addf %17, %22 : vector<64x64xf32>
    %c0_49 = arith.constant 0 : index
    %c1 = arith.constant 1 : index
    %c0_50 = arith.constant 0 : index
    %c0_51 = arith.constant 0 : index
    %24 = vector.load %arg14[%c0_49, %c1, %c0_50, %c0_51] : memref<1x10x8x96xf32, #tpu.memory_space<vmem>>, vector<1x8x8x96xf32>
    %25 = vector.shape_cast %24 : vector<1x8x8x96xf32> to vector<64x96xf32>
    %c1_52 = arith.constant 1 : index
    %c0_53 = arith.constant 0 : index
    %c0_54 = arith.constant 0 : index
    %26 = vector.load %arg6[%c1_52, %c0_53, %c0_54] : memref<3x96x64xf32, #tpu.memory_space<vmem>>, vector<1x96x64xf32>
    %27 = vector.shape_cast %26 : vector<1x96x64xf32> to vector<96x64xf32>
    %cst_55 = arith.constant dense<0.000000e+00> : vector<64x64xf32>
    %28 = tpu.matmul %25, %27, %cst_55 {dimension_numbers = #tpu.dot_dimension_numbers<[1], [0], [0], [1], [0, 0, 1, 1], [], []>} : vector<64x96xf32>, vector<96x64xf32>, vector<64x64xf32> -> vector<64x64xf32>
    %29 = arith.addf %23, %28 : vector<64x64xf32>
    %c0_56 = arith.constant 0 : index
    %c2 = arith.constant 2 : index
    %c0_57 = arith.constant 0 : index
    %c0_58 = arith.constant 0 : index
    %30 = vector.load %arg14[%c0_56, %c2, %c0_57, %c0_58] : memref<1x10x8x96xf32, #tpu.memory_space<vmem>>, vector<1x8x8x96xf32>
    %31 = vector.shape_cast %30 : vector<1x8x8x96xf32> to vector<64x96xf32>
    %c2_59 = arith.constant 2 : index
    %c0_60 = arith.constant 0 : index
    %c0_61 = arith.constant 0 : index
    %32 = vector.load %arg6[%c2_59, %c0_60, %c0_61] : memref<3x96x64xf32, #tpu.memory_space<vmem>>, vector<1x96x64xf32>
    %33 = vector.shape_cast %32 : vector<1x96x64xf32> to vector<96x64xf32>
    %cst_62 = arith.constant dense<0.000000e+00> : vector<64x64xf32>
    %34 = tpu.matmul %31, %33, %cst_62 {dimension_numbers = #tpu.dot_dimension_numbers<[1], [0], [0], [1], [0, 0, 1, 1], [], []>} : vector<64x96xf32>, vector<96x64xf32>, vector<64x64xf32> -> vector<64x64xf32>
    %35 = arith.addf %29, %34 : vector<64x64xf32>
    %c0_63 = arith.constant 0 : index
    %c0_64 = arith.constant 0 : index
    %36 = vector.load %arg7[%c0_63, %c0_64] : memref<1x64xf32, #tpu.memory_space<vmem>>, vector<1x64xf32>
    %37 = vector.broadcast %36 : vector<1x64xf32> to vector<64x64xf32>
    %38 = arith.addf %35, %37 : vector<64x64xf32>
    %cst_65 = arith.constant 0.000000e+00 : f32
    %39 = vector.broadcast %cst_65 : f32 to vector<64x64xf32>
    %40 = arith.maximumf %38, %39 : vector<64x64xf32>
    %41 = vector.shape_cast %40 : vector<64x64xf32> to vector<1x64x64xf32>
    %cst_66 = arith.constant dense<0.000000e+00> : vector<1x64xf32>
    %42 = vector.multi_reduction <add>, %41, %cst_66 [1] : vector<1x64x64xf32> to vector<1x64xf32>
    %cst_67 = arith.constant 6.400000e+01 : f32
    %43 = vector.broadcast %cst_67 : f32 to vector<1x64xf32>
    %44 = arith.divf %42, %43 : vector<1x64xf32>
    %c0_68 = arith.constant 0 : index
    %c0_69 = arith.constant 0 : index
    %45 = vector.load %arg8[%c0_68, %c0_69] : memref<64x64xf32, #tpu.memory_space<vmem>>, vector<64x64xf32>
    %cst_70 = arith.constant dense<0.000000e+00> : vector<1x64xf32>
    %46 = tpu.matmul %44, %45, %cst_70 {dimension_numbers = #tpu.dot_dimension_numbers<[1], [0], [0], [1], [0, 0, 1, 1], [], []>} : vector<1x64xf32>, vector<64x64xf32>, vector<1x64xf32> -> vector<1x64xf32>
    %c0_71 = arith.constant 0 : index
    %c0_72 = arith.constant 0 : index
    %47 = vector.load %arg9[%c0_71, %c0_72] : memref<1x64xf32, #tpu.memory_space<vmem>>, vector<1x64xf32>
    %48 = arith.addf %46, %47 : vector<1x64xf32>
    %cst_73 = arith.constant 0.000000e+00 : f32
    %49 = vector.broadcast %cst_73 : f32 to vector<1x64xf32>
    %50 = arith.maximumf %48, %49 : vector<1x64xf32>
    %c0_74 = arith.constant 0 : index
    %c0_75 = arith.constant 0 : index
    %51 = vector.load %arg10[%c0_74, %c0_75] : memref<64x128xf32, #tpu.memory_space<vmem>>, vector<64x128xf32>
    %cst_76 = arith.constant dense<0.000000e+00> : vector<1x128xf32>
    %52 = tpu.matmul %50, %51, %cst_76 {dimension_numbers = #tpu.dot_dimension_numbers<[1], [0], [0], [1], [0, 0, 1, 1], [], []>} : vector<1x64xf32>, vector<64x128xf32>, vector<1x128xf32> -> vector<1x128xf32>
    %c0_77 = arith.constant 0 : index
    %c0_78 = arith.constant 0 : index
    %53 = vector.load %arg11[%c0_77, %c0_78] : memref<1x128xf32, #tpu.memory_space<vmem>>, vector<1x128xf32>
    %54 = arith.addf %52, %53 : vector<1x128xf32>
    %55 = vector.shape_cast %54 : vector<1x128xf32> to vector<1x1x128xf32>
    %c0_79 = arith.constant 0 : index
    %c0_80 = arith.constant 0 : index
    %c0_81 = arith.constant 0 : index
    %56 = vector.load %arg12[%c0_79, %c0_80, %c0_81] : memref<1x1x128xf32, #tpu.memory_space<vmem>>, vector<1x1x128xf32>
    tpu.vector_store %arg12[%c0_79, %c0_80, %c0_81], %55 {strides = array<i32>} : memref<1x1x128xf32, #tpu.memory_space<vmem>>, vector<1x1x128xf32>,
    return
  }
  func.func @transform_0(%arg0: i32) -> (i32, i32, i32, i32) {
    %c0_i32 = arith.constant 0 : i32
    %c0_i32_0 = arith.constant 0 : i32
    %c0_i32_1 = arith.constant 0 : i32
    %c0_i32_2 = arith.constant 0 : i32
    return %arg0, %c0_i32, %c0_i32_0, %c0_i32_1 : i32, i32, i32, i32
  }
  func.func @transform_1(%arg0: i32) -> (i32, i32) {
    %c0_i32 = arith.constant 0 : i32
    %c0_i32_0 = arith.constant 0 : i32
    %c0_i32_1 = arith.constant 0 : i32
    return %c0_i32, %c0_i32_0 : i32, i32
  }
  func.func @transform_2(%arg0: i32) -> (i32, i32) {
    %c0_i32 = arith.constant 0 : i32
    %c0_i32_0 = arith.constant 0 : i32
    %c0_i32_1 = arith.constant 0 : i32
    return %c0_i32, %c0_i32_0 : i32, i32
  }
  func.func @transform_3(%arg0: i32) -> (i32, i32, i32) {
    %c0_i32 = arith.constant 0 : i32
    %c0_i32_0 = arith.constant 0 : i32
    %c0_i32_1 = arith.constant 0 : i32
    %c0_i32_2 = arith.constant 0 : i32
    return %c0_i32, %c0_i32_0, %c0_i32_1 : i32, i32, i32
  }
  func.func @transform_4(%arg0: i32) -> (i32, i32) {
    %c0_i32 = arith.constant 0 : i32
    %c0_i32_0 = arith.constant 0 : i32
    %c0_i32_1 = arith.constant 0 : i32
    return %c0_i32, %c0_i32_0 : i32, i32
  }
  func.func @transform_5(%arg0: i32) -> (i32, i32, i32) {
    %c0_i32 = arith.constant 0 : i32
    %c0_i32_0 = arith.constant 0 : i32
    %c0_i32_1 = arith.constant 0 : i32
    %c0_i32_2 = arith.constant 0 : i32
    return %c0_i32, %c0_i32_0, %c0_i32_1 : i32, i32, i32
  }
  func.func @transform_6(%arg0: i32) -> (i32, i32) {
    %c0_i32 = arith.constant 0 : i32
    %c0_i32_0 = arith.constant 0 : i32
    %c0_i32_1 = arith.constant 0 : i32
    return %c0_i32, %c0_i32_0 : i32, i32
  }
  func.func @transform_7(%arg0: i32) -> (i32, i32) {
    %c0_i32 = arith.constant 0 : i32
    %c0_i32_0 = arith.constant 0 : i32
    %c0_i32_1 = arith.constant 0 : i32
    return %c0_i32, %c0_i32_0 : i32, i32
  }
  func.func @transform_8(%arg0: i32) -> (i32, i32) {
    %c0_i32 = arith.constant 0 : i32
    %c0_i32_0 = arith.constant 0 : i32
    %c0_i32_1 = arith.constant 0 : i32
    return %c0_i32, %c0_i32_0 : i32, i32
  }
  func.func @transform_9(%arg0: i32) -> (i32, i32) {
    %c0_i32 = arith.constant 0 : i32
    %c0_i32_0 = arith.constant 0 : i32
    %c0_i32_1 = arith.constant 0 : i32
    return %c0_i32, %c0_i32_0 : i32, i32
  }
  func.func @transform_10(%arg0: i32) -> (i32, i32) {
    %c0_i32 = arith.constant 0 : i32
    %c0_i32_0 = arith.constant 0 : i32
    %c0_i32_1 = arith.constant 0 : i32
    return %c0_i32, %c0_i32_0 : i32, i32
  }
  func.func @transform_11(%arg0: i32) -> (i32, i32, i32) {
    %c0_i32 = arith.constant 0 : i32
    %c0_i32_0 = arith.constant 0 : i32
    %c0_i32_1 = arith.constant 0 : i32
    return %arg0, %c0_i32, %c0_i32_0 : i32, i32, i32
  }
}

</mosaic_0001>

<llo_original>
// kernel: tpu_custom_call.1
$region0: #{tpu_custom_call.1}
  #allocation0 [shape = 'u32[]', space=smem, size = 0x4, offset = 0x4, fixed_abs, tag = 'smem constant byte address 0x4 - core index']
  #allocation1 [shape = 'u32[144,128]{1,0:T(1,128)}', space=vmem, size = 0x12000, scoped, tag = 'internal scratch']
  #allocation2 [shape = 'f32[1,18,16,48]{3,2,1,0:T(8,128)}', space=vmem, size = 0x24000, scoped, tag = 'scratch operand']
  #allocation3 [shape = 'f32[1,10,8,96]{3,2,1,0:T(8,128)}', space=vmem, size = 0xa000, scoped, tag = 'scratch operand']
  #allocation4 [shape = 'f32[1,2,32,16]{3,2,1,0:T(8,128)}', space=vmem, size = 0x8000, scoped, tag = 'scratch operand']
  #allocation5 [shape = 'f32[1,4,16,32]{3,2,1,0:T(8,128)}', space=vmem, size = 0x8000, scoped, tag = 'scratch operand']
  %s0 = inlined_call_operand.vmem [shape: f32[2,32,32,27], index: 0, kind: input, shape index: {}]
  %s1 = inlined_call_operand.vmem [shape: f32[27,16], index: 1, kind: input, shape index: {}]
  %s2 = inlined_call_operand.vmem [shape: f32[1,16], index: 2, kind: input, shape index: {}]
  %s3 = inlined_call_operand.vmem [shape: f32[3,48,32], index: 3, kind: input, shape index: {}]
  %s4 = inlined_call_operand.vmem [shape: f32[1,32], index: 4, kind: input, shape index: {}]
  %s5 = inlined_call_operand.vmem [shape: f32[3,96,64], index: 5, kind: input, shape index: {}]
  %s6 = inlined_call_operand.vmem [shape: f32[1,64], index: 6, kind: input, shape index: {}]
  %s7 = inlined_call_operand.vmem [shape: f32[64,64], index: 7, kind: input, shape index: {}]
  %s8 = inlined_call_operand.vmem [shape: f32[1,64], index: 8, kind: input, shape index: {}]
  %s9 = inlined_call_operand.vmem [shape: f32[64,128], index: 9, kind: input, shape index: {}]
  %s10 = inlined_call_operand.vmem [shape: f32[1,128], index: 10, kind: input, shape index: {}]
  %s11 = inlined_call_operand.hbm [shape: f32[2,1,128], index: 11, kind: output, shape index: {}]
  %s12 = sld [smem:[#allocation0]]
  $region91: #{tpu_custom_call.1} parent=0
    _
  %s14 = ssub.s32 1, %s12
  %s15 = scalar_select 0, %s14, %s12
  $region1: #{tpu_custom_call.1} parent=0
    #allocation6 [shape = 'u8[1024]{0}', space=vmem, size = 0x400, scoped, tag = 'output window, operand 0']
    #allocation7 [shape = 's32[2]{0}', space=sflag, size = 0x8, scoped, tag = 'scoped memory for tpu_custom_call.1']
    %16 = vsyncpa [#allocation7], 0
    %s17 = scalar_lea.sflag [#allocation7], 1
    %18 = vsyncpa %s17, 0
    loop: start=0, step=1, limit=4
    $region2: #{tpu_custom_call.1} parent=1 // loop_pre_header
      _
    $region3: #{tpu_custom_call.1} parent=1 // loop_header
      %s20 = sphi 0, %s24
      %p21 = scmp.ge.s32.totalorder %s20, 4
      %s30 = sphi 0, %s32
      %s33 = sphi 0, %s30
      %s34 = sphi 0, %s33
      %s50 = sphi 0, %s34
      %s54 = sphi 0, %s54
      %s56 = sphi 0, %s54
      %s57 = sphi 0, %s56
      %s71 = sphi 0, %s57
      %s75 = sphi 0, %s75
      %s77 = sphi 0, %s75
      %s78 = sphi 0, %s77
      %s92 = sphi 0, %s78
      %s96 = sphi 0, %s96
      %s98 = sphi 0, %s96
      %s99 = sphi 0, %s98
      %s113 = sphi 0, %s99
      %s117 = sphi 0, %s117
      %s119 = sphi 0, %s117
      %s120 = sphi 0, %s119
      %s134 = sphi 0, %s120
      %s138 = sphi 0, %s138
      %s140 = sphi 0, %s138
      %s141 = sphi 0, %s140
      %s155 = sphi 0, %s141
      %s159 = sphi 0, %s159
      %s161 = sphi 0, %s159
      %s162 = sphi 0, %s161
      %s176 = sphi 0, %s162
      %s180 = sphi 0, %s180
      %s182 = sphi 0, %s180
      %s183 = sphi 0, %s182
      %s197 = sphi 0, %s183
      %s201 = sphi 0, %s201
      %s203 = sphi 0, %s201
      %s204 = sphi 0, %s203
      %s218 = sphi 0, %s204
      %s222 = sphi 0, %s222
      %s224 = sphi 0, %s222
      %s225 = sphi 0, %s224
      %s239 = sphi 0, %s225
      %s243 = sphi 0, %s243
      %s245 = sphi 0, %s243
      %s246 = sphi 0, %s245
      %s260 = sphi 0, %s246
      %s266 = sphi 0, %s268
      %s269 = sphi 0, %s266
      %s270 = sphi 0, %s269
      %s286 = sphi 0, %s270
    $region4: #{tpu_custom_call.1} parent=1 // loop_header_branch
      %23 = sbr.rel (%p21) target = $region8
    $region5: #{tpu_custom_call.1} parent=1 // loop_body
      %s25 = ssub.s32 %s20, 1
      %s26 = ssub.s32 %s20, 2
      %s27 = sadd.s32 %s20, 1
      %s28 = ssub.s32 %s20, %s27
      %p29 = scmp.eq.s32.totalorder %s28, 0
      %s31 = sadd.s32 %s30, 1
      %s32 = scalar_select %p29, %s30, %s31
      %p35 = pneg %p29
      %p36 = scmp.eq.s32.totalorder %s20, 1
      %p37 = por %p35, %p36
      %p38 = scmp.ne.s32.totalorder %s30, %s33
      %p39 = scmp.eq.s32.totalorder %s20, 0
      %p40 = por %p38, %p39
      %p41 = scmp.ne.s32.totalorder %s30, %s33
      %p42 = scmp.eq.s32.totalorder %s25, 1
      %p43 = por %p41, %p42
      %p44 = scmp.ne.s32.totalorder %s33, %s34
      %p45 = scmp.eq.s32.totalorder %s25, 0
      %p46 = por %p44, %p45
      %p47 = scmp.ne.s32.totalorder %s33, %s34
      %p48 = scmp.eq.s32.totalorder %s26, 1
      %p49 = por %p47, %p48
      %p51 = scmp.ne.s32.totalorder %s34, %s50
      %p52 = scmp.eq.s32.totalorder %s26, 0
      %p53 = por %p51, %p52
      %s55 = sadd.s32 %s54, 1
      %p58 = scmp.eq.s32.totalorder %s20, 1
      %p59 = scmp.ne.s32.totalorder %s54, %s56
      %p60 = scmp.eq.s32.totalorder %s20, 0
      %p61 = por %p59, %p60
      %p62 = scmp.ne.s32.totalorder %s54, %s56
      %p63 = scmp.eq.s32.totalorder %s25, 1
      %p64 = por %p62, %p63
      %p65 = scmp.ne.s32.totalorder %s56, %s57
      %p66 = scmp.eq.s32.totalorder %s25, 0
      %p67 = por %p65, %p66
      %p68 = scmp.ne.s32.totalorder %s56, %s57
      %p69 = scmp.eq.s32.totalorder %s26, 1
      %p70 = por %p68, %p69
      %p72 = scmp.ne.s32.totalorder %s57, %s71
      %p73 = scmp.eq.s32.totalorder %s26, 0
      %p74 = por %p72, %p73
      %s76 = sadd.s32 %s75, 1
      %p79 = scmp.eq.s32.totalorder %s20, 1
      %p80 = scmp.ne.s32.totalorder %s75, %s77
      %p81 = scmp.eq.s32.totalorder %s20, 0
      %p82 = por %p80, %p81
      %p83 = scmp.ne.s32.totalorder %s75, %s77
      %p84 = scmp.eq.s32.totalorder %s25, 1
      %p85 = por %p83, %p84
      %p86 = scmp.ne.s32.totalorder %s77, %s78
      %p87 = scmp.eq.s32.totalorder %s25, 0
      %p88 = por %p86, %p87
      %p89 = scmp.ne.s32.totalorder %s77, %s78
      %p90 = scmp.eq.s32.totalorder %s26, 1
      %p91 = por %p89, %p90
      %p93 = scmp.ne.s32.totalorder %s78, %s92
      %p94 = scmp.eq.s32.totalorder %s26, 0
      %p95 = por %p93, %p94
      %s97 = sadd.s32 %s96, 1
      %p100 = scmp.eq.s32.totalorder %s20, 1
      %p101 = scmp.ne.s32.totalorder %s96, %s98
      %p102 = scmp.eq.s32.totalorder %s20, 0
      %p103 = por %p101, %p102
      %p104 = scmp.ne.s32.totalorder %s96, %s98
      %p105 = scmp.eq.s32.totalorder %s25, 1
      %p106 = por %p104, %p105
      %p107 = scmp.ne.s32.totalorder %s98, %s99
      %p108 = scmp.eq.s32.totalorder %s25, 0
      %p109 = por %p107, %p108
      %p110 = scmp.ne.s32.totalorder %s98, %s99
      %p111 = scmp.eq.s32.totalorder %s26, 1
      %p112 = por %p110, %p111
      %p114 = scmp.ne.s32.totalorder %s99, %s113
      %p115 = scmp.eq.s32.totalorder %s26, 0
      %p116 = por %p114, %p115
      %s118 = sadd.s32 %s117, 1
      %p121 = scmp.eq.s32.totalorder %s20, 1
      %p122 = scmp.ne.s32.totalorder %s117, %s119
      %p123 = scmp.eq.s32.totalorder %s20, 0
      %p124 = por %p122, %p123
      %p125 = scmp.ne.s32.totalorder %s117, %s119
      %p126 = scmp.eq.s32.totalorder %s25, 1
      %p127 = por %p125, %p126
      %p128 = scmp.ne.s32.totalorder %s119, %s120
      %p129 = scmp.eq.s32.totalorder %s25, 0
      %p130 = por %p128, %p129
      %p131 = scmp.ne.s32.totalorder %s119, %s120
      %p132 = scmp.eq.s32.totalorder %s26, 1
      %p133 = por %p131, %p132
      %p135 = scmp.ne.s32.totalorder %s120, %s134
      %p136 = scmp.eq.s32.totalorder %s26, 0
      %p137 = por %p135, %p136
      %s139 = sadd.s32 %s138, 1
      %p142 = scmp.eq.s32.totalorder %s20, 1
      %p143 = scmp.ne.s32.totalorder %s138, %s140
      %p144 = scmp.eq.s32.totalorder %s20, 0
      %p145 = por %p143, %p144
      %p146 = scmp.ne.s32.totalorder %s138, %s140
      %p147 = scmp.eq.s32.totalorder %s25, 1
      %p148 = por %p146, %p147
      %p149 = scmp.ne.s32.totalorder %s140, %s141
      %p150 = scmp.eq.s32.totalorder %s25, 0
      %p151 = por %p149, %p150
      %p152 = scmp.ne.s32.totalorder %s140, %s141
      %p153 = scmp.eq.s32.totalorder %s26, 1
      %p154 = por %p152, %p153
      %p156 = scmp.ne.s32.totalorder %s141, %s155
      %p157 = scmp.eq.s32.totalorder %s26, 0
      %p158 = por %p156, %p157
      %s160 = sadd.s32 %s159, 1
      %p163 = scmp.eq.s32.totalorder %s20, 1
      %p164 = scmp.ne.s32.totalorder %s159, %s161
      %p165 = scmp.eq.s32.totalorder %s20, 0
      %p166 = por %p164, %p165
      %p167 = scmp.ne.s32.totalorder %s159, %s161
      %p168 = scmp.eq.s32.totalorder %s25, 1
      %p169 = por %p167, %p168
      %p170 = scmp.ne.s32.totalorder %s161, %s162
      %p171 = scmp.eq.s32.totalorder %s25, 0
      %p172 = por %p170, %p171
      %p173 = scmp.ne.s32.totalorder %s161, %s162
      %p174 = scmp.eq.s32.totalorder %s26, 1
      %p175 = por %p173, %p174
      %p177 = scmp.ne.s32.totalorder %s162, %s176
      %p178 = scmp.eq.s32.totalorder %s26, 0
      %p179 = por %p177, %p178
      %s181 = sadd.s32 %s180, 1
      %p184 = scmp.eq.s32.totalorder %s20, 1
      %p185 = scmp.ne.s32.totalorder %s180, %s182
      %p186 = scmp.eq.s32.totalorder %s20, 0
      %p187 = por %p185, %p186
      %p188 = scmp.ne.s32.totalorder %s180, %s182
      %p189 = scmp.eq.s32.totalorder %s25, 1
      %p190 = por %p188, %p189
      %p191 = scmp.ne.s32.totalorder %s182, %s183
      %p192 = scmp.eq.s32.totalorder %s25, 0
      %p193 = por %p191, %p192
      %p194 = scmp.ne.s32.totalorder %s182, %s183
      %p195 = scmp.eq.s32.totalorder %s26, 1
      %p196 = por %p194, %p195
      %p198 = scmp.ne.s32.totalorder %s183, %s197
      %p199 = scmp.eq.s32.totalorder %s26, 0
      %p200 = por %p198, %p199
      %s202 = sadd.s32 %s201, 1
      %p205 = scmp.eq.s32.totalorder %s20, 1
      %p206 = scmp.ne.s32.totalorder %s201, %s203
      %p207 = scmp.eq.s32.totalorder %s20, 0
      %p208 = por %p206, %p207
      %p209 = scmp.ne.s32.totalorder %s201, %s203
      %p210 = scmp.eq.s32.totalorder %s25, 1
      %p211 = por %p209, %p210
      %p212 = scmp.ne.s32.totalorder %s203, %s204
      %p213 = scmp.eq.s32.totalorder %s25, 0
      %p214 = por %p212, %p213
      %p215 = scmp.ne.s32.totalorder %s203, %s204
      %p216 = scmp.eq.s32.totalorder %s26, 1
      %p217 = por %p215, %p216
      %p219 = scmp.ne.s32.totalorder %s204, %s218
      %p220 = scmp.eq.s32.totalorder %s26, 0
      %p221 = por %p219, %p220
      %s223 = sadd.s32 %s222, 1
      %p226 = scmp.eq.s32.totalorder %s20, 1
      %p227 = scmp.ne.s32.totalorder %s222, %s224
      %p228 = scmp.eq.s32.totalorder %s20, 0
      %p229 = por %p227, %p228
      %p230 = scmp.ne.s32.totalorder %s222, %s224
      %p231 = scmp.eq.s32.totalorder %s25, 1
      %p232 = por %p230, %p231
      %p233 = scmp.ne.s32.totalorder %s224, %s225
      %p234 = scmp.eq.s32.totalorder %s25, 0
      %p235 = por %p233, %p234
      %p236 = scmp.ne.s32.totalorder %s224, %s225
      %p237 = scmp.eq.s32.totalorder %s26, 1
      %p238 = por %p236, %p237
      %p240 = scmp.ne.s32.totalorder %s225, %s239
      %p241 = scmp.eq.s32.totalorder %s26, 0
      %p242 = por %p240, %p241
      %s244 = sadd.s32 %s243, 1
      %p247 = scmp.eq.s32.totalorder %s20, 1
      %p248 = scmp.ne.s32.totalorder %s243, %s245
      %p249 = scmp.eq.s32.totalorder %s20, 0
      %p250 = por %p248, %p249
      %p251 = scmp.ne.s32.totalorder %s243, %s245
      %p252 = scmp.eq.s32.totalorder %s25, 1
      %p253 = por %p251, %p252
      %p254 = scmp.ne.s32.totalorder %s245, %s246
      %p255 = scmp.eq.s32.totalorder %s25, 0
      %p256 = por %p254, %p255
      %p257 = scmp.ne.s32.totalorder %s245, %s246
      %p258 = scmp.eq.s32.totalorder %s26, 1
      %p259 = por %p257, %p258
      %p261 = scmp.ne.s32.totalorder %s246, %s260
      %p262 = scmp.eq.s32.totalorder %s26, 0
      %p263 = por %p261, %p262
      %s264 = ssub.s32 %s20, %s27
      %p265 = scmp.eq.s32.totalorder %s264, 0
      %s267 = sadd.s32 %s266, 1
      %s268 = scalar_select %p265, %s266, %s267
      %p271 = pneg %p265
      %p272 = scmp.eq.s32.totalorder %s20, 1
      %p273 = por %p271, %p272
      %p274 = scmp.ne.s32.totalorder %s266, %s269
      %p275 = scmp.eq.s32.totalorder %s20, 0
      %p276 = por %p274, %p275
      %p277 = scmp.ne.s32.totalorder %s266, %s269
      %p278 = scmp.eq.s32.totalorder %s25, 1
      %p279 = por %p277, %p278
      %p280 = scmp.ne.s32.totalorder %s269, %s270
      %p281 = scmp.eq.s32.totalorder %s25, 0
      %p282 = por %p280, %p281
      %p283 = scmp.ne.s32.totalorder %s269, %s270
      %p284 = scmp.eq.s32.totalorder %s26, 1
      %p285 = por %p283, %p284
      %p287 = scmp.ne.s32.totalorder %s270, %s286
      %p288 = scmp.eq.s32.totalorder %s26, 0
      %p289 = por %p287, %p288
      %p290 = scmp.le.s32.totalorder 1, %s20
      %p291 = scmp.lt.s32.totalorder %s20, 3
      %p292 = pnand %p290, %p291
      %p293 = pneg %p292
      // Predicated region
      $region9: #{tpu_custom_call.1} parent=5 // pred_check
        _
      $region10: #{tpu_custom_call.1} parent=5 // pred_check_branch
        %295 = sbr.rel (%p292) target = $region12
      $region11: #{tpu_custom_call.1} parent=5 // pred_region
        %s296 = ssub.s32 %s20, 1
        // Predicated region
        $region13: #{tpu_custom_call.1} parent=11 // pred_check
          %p297 = pneg %p67
        $region14: #{tpu_custom_call.1} parent=11 // pred_check_branch
          %299 = sbr.rel (%p297) target = $region16
        $region15: #{tpu_custom_call.1} parent=11 // pred_region
          _
        $region16: #{tpu_custom_call.1} parent=11 // pred_fallthru
          _
        // Predicated region
        $region17: #{tpu_custom_call.1} parent=11 // pred_check
          %p300 = pneg %p88
        $region18: #{tpu_custom_call.1} parent=11 // pred_check_branch
          %302 = sbr.rel (%p300) target = $region20
        $region19: #{tpu_custom_call.1} parent=11 // pred_region
          _
        $region20: #{tpu_custom_call.1} parent=11 // pred_fallthru
          _
        // Predicated region
        $region21: #{tpu_custom_call.1} parent=11 // pred_check
          %p303 = pneg %p109
        $region22: #{tpu_custom_call.1} parent=11 // pred_check_branch
          %305 = sbr.rel (%p303) target = $region24
        $region23: #{tpu_custom_call.1} parent=11 // pred_region
          _
        $region24: #{tpu_custom_call.1} parent=11 // pred_fallthru
          _
        // Predicated region
        $region25: #{tpu_custom_call.1} parent=11 // pred_check
          %p306 = pneg %p130
        $region26: #{tpu_custom_call.1} parent=11 // pred_check_branch
          %308 = sbr.rel (%p306) target = $region28
        $region27: #{tpu_custom_call.1} parent=11 // pred_region
          _
        $region28: #{tpu_custom_call.1} parent=11 // pred_fallthru
          _
        // Predicated region
        $region29: #{tpu_custom_call.1} parent=11 // pred_check
          %p309 = pneg %p151
        $region30: #{tpu_custom_call.1} parent=11 // pred_check_branch
          %311 = sbr.rel (%p309) target = $region32
        $region31: #{tpu_custom_call.1} parent=11 // pred_region
          _
        $region32: #{tpu_custom_call.1} parent=11 // pred_fallthru
          _
        // Predicated region
        $region33: #{tpu_custom_call.1} parent=11 // pred_check
          %p312 = pneg %p172
        $region34: #{tpu_custom_call.1} parent=11 // pred_check_branch
          %314 = sbr.rel (%p312) target = $region36
        $region35: #{tpu_custom_call.1} parent=11 // pred_region
          _
        $region36: #{tpu_custom_call.1} parent=11 // pred_fallthru
          _
        // Predicated region
        $region37: #{tpu_custom_call.1} parent=11 // pred_check
          %p315 = pneg %p193
        $region38: #{tpu_custom_call.1} parent=11 // pred_check_branch
          %317 = sbr.rel (%p315) target = $region40
        $region39: #{tpu_custom_call.1} parent=11 // pred_region
          _
        $region40: #{tpu_custom_call.1} parent=11 // pred_fallthru
          _
        // Predicated region
        $region41: #{tpu_custom_call.1} parent=11 // pred_check
          %p318 = pneg %p214
        $region42: #{tpu_custom_call.1} parent=11 // pred_check_branch
          %320 = sbr.rel (%p318) target = $region44
        $region43: #{tpu_custom_call.1} parent=11 // pred_region
          _
        $region44: #{tpu_custom_call.1} parent=11 // pred_fallthru
          _
        // Predicated region
        $region45: #{tpu_custom_call.1} parent=11 // pred_check
          %p321 = pneg %p235
        $region46: #{tpu_custom_call.1} parent=11 // pred_check_branch
          %323 = sbr.rel (%p321) target = $region48
        $region47: #{tpu_custom_call.1} parent=11 // pred_region
          _
        $region48: #{tpu_custom_call.1} parent=11 // pred_fallthru
          _
        // Predicated region
        $region49: #{tpu_custom_call.1} parent=11 // pred_check
          %p324 = pneg %p256
        $region50: #{tpu_custom_call.1} parent=11 // pred_check_branch
          %326 = sbr.rel (%p324) target = $region52
        $region51: #{tpu_custom_call.1} parent=11 // pred_region
          _
        $region52: #{tpu_custom_call.1} parent=11 // pred_fallthru
          _
      $region12: #{tpu_custom_call.1} parent=5 // pred_fallthru
        _
      %p327 = scmp.lt.s32.totalorder %s20, 2
      // Predicated region
      $region53: #{tpu_custom_call.1} parent=5 // pred_check
        %p328 = pneg %p327
      $region54: #{tpu_custom_call.1} parent=5 // pred_check_branch
        %330 = sbr.rel (%p328) target = $region56
      $region55: #{tpu_custom_call.1} parent=5 // pred_region
        // Predicated region
        $region57: #{tpu_custom_call.1} parent=55 // pred_check
          %p331 = pneg %p40
        $region58: #{tpu_custom_call.1} parent=55 // pred_check_branch
          %333 = sbr.rel (%p331) target = $region60
        $region59: #{tpu_custom_call.1} parent=55 // pred_region
          %p334 = scmp.lt.s32.totalorder %s20, 1
          %s335 = scalar_select %p334, %s20, 1
          %s336 = smul.addr %s335, 128
          %s337 = smul.addr %s336, 8
          %s338 = scalar_lea.vmem %s0, %s337
        $region60: #{tpu_custom_call.1} parent=55 // pred_fallthru
          _
      $region56: #{tpu_custom_call.1} parent=5 // pred_fallthru
        _
      %p339 = scmp.le.s32.totalorder 1, %s20
      %p340 = scmp.lt.s32.totalorder %s20, 3
      %p341 = pnand %p339, %p340
      %p342 = pneg %p341
      // Predicated region
      $region61: #{tpu_custom_call.1} parent=5 // pred_check
        _
      $region62: #{tpu_custom_call.1} parent=5 // pred_check_branch
        %344 = sbr.rel (%p341) target = $region64
      $region63: #{tpu_custom_call.1} parent=5 // pred_region
        %s345 = ssub.s32 %s20, 1
        %p346 = scmp.lt.s32.totalorder %s25, 1
        %s347 = scalar_select %p346, %s25, 1
        %s348 = smul.addr %s347, 128
        %s349 = smul.addr %s348, 8
        %s350 = scalar_lea.vmem %s0, %s349
        %p351 = pneg %p46
        %p352 = pneg %p43
        %p353 = pneg %p67
        %p354 = pneg %p64
        %p355 = pneg %p88
        %p356 = pneg %p85
        %p357 = pneg %p109
        %p358 = pneg %p106
        %p359 = pneg %p130
        %p360 = pneg %p127
        %p361 = pneg %p151
        %p362 = pneg %p148
        %p363 = pneg %p172
        %p364 = pneg %p169
        %p365 = pneg %p193
        %p366 = pneg %p190
        %p367 = pneg %p214
        %p368 = pneg %p211
        %p369 = pneg %p235
        %p370 = pneg %p232
        %p371 = pneg %p256
        %p372 = pneg %p253
        %p373 = pneg %p282
        %p374 = pneg %p279
        %s375 = sand.u32 %s269, 1
        %s376 = scalar_lea.sflag [#allocation7], %s375
        %s377 = sand.u32 %s269, 1
        %s378 = scalar_lea.vmem [#allocation6], %s377
        %p379 = scmp.lt.s32.totalorder %s25, 1
        %s380 = scalar_select %p379, %s25, 1
        %s381 = smul.addr %s380, 128
        %s382 = smul.addr %s381, 8
        %s383 = scalar_lea.vmem %s0, %s382
        %vm384 = vcmask 392192
        %385 = vst.msk [vmem:[#allocation2] sm:$0xff] %vm384, 0.0
        %386 = vst.msk [vmem:[#allocation2 + $0x8] sm:$0xff] %vm384, 0.0
        %s387 = scalar_lea.vmem [#allocation2], 272
        %388 = vst.msk [vmem:[%s387] sm:$0xff] %vm384, 0.0
        %389 = vst.msk [vmem:[%s387 + $0x8] sm:$0xff] %vm384, 0.0
        %vm390 = vcmask 385024
        %391 = vst.msk [vmem:[#allocation2] sm:$0x1] %vm390, 0.0
        %392 = vst.msk [vmem:[#allocation2 + $0x10] sm:$0x1] %vm390, 0.0
        %393 = vst.msk [vmem:[#allocation2 + $0x20] sm:$0x1] %vm390, 0.0
        %394 = vst.msk [vmem:[#allocation2 + $0x30] sm:$0x1] %vm390, 0.0
        %395 = vst.msk [vmem:[#allocation2 + $0x40] sm:$0x1] %vm390, 0.0
        %396 = vst.msk [vmem:[#allocation2 + $0x50] sm:$0x1] %vm390, 0.0
        %397 = vst.msk [vmem:[#allocation2 + $0x60] sm:$0x1] %vm390, 0.0
        %398 = vst.msk [vmem:[#allocation2 + $0x70] sm:$0x1] %vm390, 0.0
        %399 = vst.msk [vmem:[#allocation2 + $0x80] sm:$0x1] %vm390, 0.0
        %400 = vst.msk [vmem:[#allocation2 + $0x90] sm:$0x1] %vm390, 0.0
        %401 = vst.msk [vmem:[#allocation2 + $0xa0] sm:$0x1] %vm390, 0.0
        %402 = vst.msk [vmem:[#allocation2 + $0xb0] sm:$0x1] %vm390, 0.0
        %403 = vst.msk [vmem:[#allocation2 + $0xc0] sm:$0x1] %vm390, 0.0
        %404 = vst.msk [vmem:[#allocation2 + $0xd0] sm:$0x1] %vm390, 0.0
        %405 = vst.msk [vmem:[#allocation2 + $0xe0] sm:$0x1] %vm390, 0.0
        %406 = vst.msk [vmem:[#allocation2 + $0xf0] sm:$0x1] %vm390, 0.0
        %407 = vst.msk [vmem:[#allocation2 + $0x100] sm:$0x1] %vm390, 0.0
        %408 = vst.msk [vmem:[#allocation2 + $0x110] sm:$0x1] %vm390, 0.0
        %409 = vst.msk [vmem:[#allocation2 + $0xf] sm:$0x1] %vm390, 0.0
        %410 = vst.msk [vmem:[#allocation2 + $0x1f] sm:$0x1] %vm390, 0.0
        %411 = vst.msk [vmem:[#allocation2 + $0x2f] sm:$0x1] %vm390, 0.0
        %412 = vst.msk [vmem:[#allocation2 + $0x3f] sm:$0x1] %vm390, 0.0
        %413 = vst.msk [vmem:[#allocation2 + $0x4f] sm:$0x1] %vm390, 0.0
        %414 = vst.msk [vmem:[#allocation2 + $0x5f] sm:$0x1] %vm390, 0.0
        %415 = vst.msk [vmem:[#allocation2 + $0x6f] sm:$0x1] %vm390, 0.0
        %416 = vst.msk [vmem:[#allocation2 + $0x7f] sm:$0x1] %vm390, 0.0
        %417 = vst.msk [vmem:[#allocation2 + $0x8f] sm:$0x1] %vm390, 0.0
        %418 = vst.msk [vmem:[#allocation2 + $0x9f] sm:$0x1] %vm390, 0.0
        %419 = vst.msk [vmem:[#allocation2 + $0xaf] sm:$0x1] %vm390, 0.0
        %420 = vst.msk [vmem:[#allocation2 + $0xbf] sm:$0x1] %vm390, 0.0
        %421 = vst.msk [vmem:[#allocation2 + $0xcf] sm:$0x1] %vm390, 0.0
        %422 = vst.msk [vmem:[#allocation2 + $0xdf] sm:$0x1] %vm390, 0.0
        %423 = vst.msk [vmem:[#allocation2 + $0xef] sm:$0x1] %vm390, 0.0
        %424 = vst.msk [vmem:[#allocation2 + $0xff] sm:$0x1] %vm390, 0.0
        %425 = vst.msk [vmem:[#allocation2 + $0x10f] sm:$0x1] %vm390, 0.0
        %426 = vst.msk [vmem:[#allocation2 + $0x11f] sm:$0x1] %vm390, 0.0
        %vm427 = vcmask 785408
        %428 = vst.msk [vmem:[#allocation3] sm:$0xff] %vm427, 0.0
        %s429 = scalar_lea.vmem [#allocation3], 72
        %430 = vst.msk [vmem:[%s429] sm:$0xff] %vm427, 0.0
        %vm431 = vcmask 778240
        %432 = vst.msk [vmem:[#allocation3] sm:$0x1] %vm431, 0.0
        %433 = vst.msk [vmem:[#allocation3 + $0x8] sm:$0x1] %vm431, 0.0
        %434 = vst.msk [vmem:[#allocation3 + $0x10] sm:$0x1] %vm431, 0.0
        %435 = vst.msk [vmem:[#allocation3 + $0x18] sm:$0x1] %vm431, 0.0
        %436 = vst.msk [vmem:[#allocation3 + $0x20] sm:$0x1] %vm431, 0.0
        %437 = vst.msk [vmem:[#allocation3 + $0x28] sm:$0x1] %vm431, 0.0
        %438 = vst.msk [vmem:[#allocation3 + $0x30] sm:$0x1] %vm431, 0.0
        %439 = vst.msk [vmem:[#allocation3 + $0x38] sm:$0x1] %vm431, 0.0
        %440 = vst.msk [vmem:[#allocation3 + $0x40] sm:$0x1] %vm431, 0.0
        %441 = vst.msk [vmem:[#allocation3 + $0x48] sm:$0x1] %vm431, 0.0
        %442 = vst.msk [vmem:[#allocation3 + $0x7] sm:$0x1] %vm431, 0.0
        %443 = vst.msk [vmem:[#allocation3 + $0xf] sm:$0x1] %vm431, 0.0
        %444 = vst.msk [vmem:[#allocation3 + $0x17] sm:$0x1] %vm431, 0.0
        %445 = vst.msk [vmem:[#allocation3 + $0x1f] sm:$0x1] %vm431, 0.0
        %446 = vst.msk [vmem:[#allocation3 + $0x27] sm:$0x1] %vm431, 0.0
        %447 = vst.msk [vmem:[#allocation3 + $0x2f] sm:$0x1] %vm431, 0.0
        %448 = vst.msk [vmem:[#allocation3 + $0x37] sm:$0x1] %vm431, 0.0
        %449 = vst.msk [vmem:[#allocation3 + $0x3f] sm:$0x1] %vm431, 0.0
        %450 = vst.msk [vmem:[#allocation3 + $0x47] sm:$0x1] %vm431, 0.0
        %451 = vst.msk [vmem:[#allocation3 + $0x4f] sm:$0x1] %vm431, 0.0
        %v452 = vld [vmem:[%s1] sm:$0xff]
        %v453 = vld [vmem:[%s1 + $0x8] sm:$0xff]
        %v454 = vld [vmem:[%s1 + $0x10] sm:$0xff]
        %v455 = vld [vmem:[%s1 + $0x18] sm:$0x7]
        %v456 = vld [vmem:[%s2] sm:$0x1]
        loop: start=0, step=1, limit=8
        $region65: #{tpu_custom_call.1} parent=63 // loop_pre_header
          _
        $region66: #{tpu_custom_call.1} parent=63 // loop_header
          %s458 = sphi 0, %s462
          %p459 = scmp.ge.s32.totalorder %s458, 8
        $region67: #{tpu_custom_call.1} parent=63 // loop_header_branch
          %461 = sbr.rel (%p459) target = $region71
        $region68: #{tpu_custom_call.1} parent=63 // loop_body
          %s463 = smul.u32 %s458, 4
          %s464 = smul.u32 %s463, 32
          %s465 = scalar_lea.vmem %s383, %s464
          %v466 = vld [vmem:[%s465] sm:$0xff]
          %v467 = vld [vmem:[%s465 + $0x8] sm:$0xff]
          %v468 = vld [vmem:[%s465 + $0x10] sm:$0xff]
          %v469 = vld [vmem:[%s465 + $0x18] sm:$0xff]
          %v470 = vld [vmem:[%s465 + $0x20] sm:$0xff]
          %v471 = vld [vmem:[%s465 + $0x28] sm:$0xff]
          %v472 = vld [vmem:[%s465 + $0x30] sm:$0xff]
          %v473 = vld [vmem:[%s465 + $0x38] sm:$0xff]
          %v474 = vld [vmem:[%s465 + $0x40] sm:$0xff]
          %v475 = vld [vmem:[%s465 + $0x48] sm:$0xff]
          %v476 = vld [vmem:[%s465 + $0x50] sm:$0xff]
          %v477 = vld [vmem:[%s465 + $0x58] sm:$0xff]
          %v478 = vld [vmem:[%s465 + $0x60] sm:$0xff]
          %v479 = vld [vmem:[%s465 + $0x68] sm:$0xff]
          %v480 = vld [vmem:[%s465 + $0x70] sm:$0xff]
          %v481 = vld [vmem:[%s465 + $0x78] sm:$0xff]
          %v483 = vlaneseq
          %v484 = vshrl.u32 %v483, 7
          %v485 = vsub.s32 0, %v484
          %v486 = vrot.slane %v456, %v485
          %vm488 = vcmask 220160
          %v490 = vsel %vm488, %v466, 0
          %v493 = vsel %vm488, %v467, 0
          %v496 = vsel %vm488, %v468, 0
          %v499 = vsel %vm488, %v469, 0
          %v502 = vsel %vm488, %v470, 0
          %v505 = vsel %vm488, %v471, 0
          %v508 = vsel %vm488, %v472, 0
          %v511 = vsel %vm488, %v473, 0
          %v514 = vsel %vm488, %v474, 0
          %v517 = vsel %vm488, %v475, 0
          %v520 = vsel %vm488, %v476, 0
          %v523 = vsel %vm488, %v477, 0
          %v526 = vsel %vm488, %v478, 0
          %v529 = vsel %vm488, %v479, 0
          %v532 = vsel %vm488, %v480, 0
          %v535 = vsel %vm488, %v481, 0
          %vm537 = vcmask 1042432
          %v539 = vsel %vm537, %v455, 0
          %541 = vmatprep.subr.mxu0 0.0
          %542 = vmatpush1.msra.mxu0 %v452
          %543 = vmatprep.subr.mxu0 0.0
          %544 = vmatpush1.msra.mxu0 %v453
          %545 = vmatprep.subr.mxu0 0.0
          %546 = vmatpush1.msra.mxu0 %v454
          %547 = vmatprep.subr.mxu0 0.0
          %548 = vmatpush1.msra.mxu0 %v539
          %549 = vmatprep.subr.mxu0 0.0
          %550 = vmatpush1.msra.mxu0 0.0
          %551 = vmatprep.subr.mxu0 0.0
          %552 = vmatpush1.msra.mxu0 0.0
          %553 = vmatprep.subr.mxu0 0.0
          %554 = vmatpush1.msra.mxu0 0.0
          %555 = vmatprep.subr.mxu0 0.0
          %556 = vmatpush1.msra.mxu0 0.0
          %557 = vmatprep.subr.mxu0 0.0
          %558 = vmatpush1.msra.mxu0 0.0
          %559 = vmatprep.subr.mxu0 0.0
          %560 = vmatpush1.msra.mxu0 0.0
          %561 = vmatprep.subr.mxu0 0.0
          %562 = vmatpush1.msra.mxu0 0.0
          %563 = vmatprep.subr.mxu0 0.0
          %564 = vmatpush1.msra.mxu0 0.0
          %565 = vmatprep.subr.mxu0 0.0
          %566 = vmatpush1.msra.mxu0 0.0
          %567 = vmatprep.subr.mxu0 0.0
          %568 = vmatpush1.msra.mxu0 0.0
          %569 = vmatprep.subr.mxu0 0.0
          %570 = vmatpush1.msra.mxu0 0.0
          %571 = vmatprep.subr.mxu0 0.0
          %572 = vmatpush1.msra.mxu0 0.0
          %573 = vmatprep.subr.mxu0 0.0
          %574 = vmatpush1.msra.mxu0 0.0
          %575 = vmatprep.subr.mxu0 0.0
          %576 = vmatpush1.msra.mxu0 0.0
          %577 = vmatprep.subr.mxu0 0.0
          %578 = vmatpush1.msra.mxu0 0.0
          %579 = vmatprep.subr.mxu0 0.0
          %580 = vmatpush1.msra.mxu0 0.0
          %581 = vmatprep.subr.mxu0 0.0
          %582 = vmatpush1.msra.mxu0 0.0
          %583 = vmatprep.subr.mxu0 0.0
          %584 = vmatpush1.msra.mxu0 0.0
          %585 = vmatprep.subr.mxu0 0.0
          %586 = vmatpush1.msra.mxu0 0.0
          %587 = vmatprep.subr.mxu0 0.0
          %588 = vmatpush1.msra.mxu0 0.0
          %589 = vmatprep.subr.mxu0 0.0
          %590 = vmatpush1.msra.mxu0 0.0
          %591 = vmatprep.subr.mxu0 0.0
          %592 = vmatpush1.msra.mxu0 0.0
          %593 = vmatprep.subr.mxu0 0.0
          %594 = vmatpush1.msra.mxu0 0.0
          %595 = vmatprep.subr.mxu0 0.0
          %596 = vmatpush1.msra.mxu0 0.0
          %597 = vmatprep.subr.mxu0 0.0
          %598 = vmatpush1.msra.mxu0 0.0
          %599 = vmatprep.subr.mxu0 0.0
          %600 = vmatpush1.msra.mxu0 0.0
          %601 = vmatprep.subr.mxu0 0.0
          %602 = vmatpush1.msra.mxu0 0.0
          %603 = vmatprep.subr.mxu0 0.0
          %604 = vmatpush1.msra.mxu0 0.0
          %605 = vmatprep.mubr.f32.mxu0 0.0
          %606 = vmatmul.mubr.f32.gmra.mrb[0].mxu0 %v490
          %v607 = vpop.f32.mrb[0].mxu0
          %v608 = vadd.f32 %v486, %v607
          %v609 = vpop.f32.mrb[0].mxu0
          %610 = vmatprep.mubr.f32.mxu0 0.0
          %611 = vmatmul.mubr.f32.gmra.mrb[0].mxu0 %v493
          %v612 = vpop.f32.mrb[0].mxu0
          %v613 = vadd.f32 %v486, %v612
          %v614 = vpop.f32.mrb[0].mxu0
          %615 = vmatprep.mubr.f32.mxu0 0.0
          %616 = vmatmul.mubr.f32.gmra.mrb[0].mxu0 %v496
          %v617 = vpop.f32.mrb[0].mxu0
          %v618 = vadd.f32 %v486, %v617
          %v619 = vpop.f32.mrb[0].mxu0
          %620 = vmatprep.mubr.f32.mxu0 0.0
          %621 = vmatmul.mubr.f32.gmra.mrb[0].mxu0 %v499
          %v622 = vpop.f32.mrb[0].mxu0
          %v623 = vadd.f32 %v486, %v622
          %v624 = vpop.f32.mrb[0].mxu0
          %625 = vmatprep.mubr.f32.mxu0 0.0
          %626 = vmatmul.mubr.f32.gmra.mrb[0].mxu0 %v502
          %v627 = vpop.f32.mrb[0].mxu0
          %v628 = vadd.f32 %v486, %v627
          %v629 = vpop.f32.mrb[0].mxu0
          %630 = vmatprep.mubr.f32.mxu0 0.0
          %631 = vmatmul.mubr.f32.gmra.mrb[0].mxu0 %v505
          %v632 = vpop.f32.mrb[0].mxu0
          %v633 = vadd.f32 %v486, %v632
          %v634 = vpop.f32.mrb[0].mxu0
          %635 = vmatprep.mubr.f32.mxu0 0.0
          %636 = vmatmul.mubr.f32.gmra.mrb[0].mxu0 %v508
          %v637 = vpop.f32.mrb[0].mxu0
          %v638 = vadd.f32 %v486, %v637
          %v639 = vpop.f32.mrb[0].mxu0
          %640 = vmatprep.mubr.f32.mxu0 0.0
          %641 = vmatmul.mubr.f32.gmra.mrb[0].mxu0 %v511
          %v642 = vpop.f32.mrb[0].mxu0
          %v643 = vadd.f32 %v486, %v642
          %v644 = vpop.f32.mrb[0].mxu0
          %645 = vmatprep.mubr.f32.mxu0 0.0
          %646 = vmatmul.mubr.f32.gmra.mrb[0].mxu0 %v514
          %v647 = vpop.f32.mrb[0].mxu0
          %v648 = vadd.f32 %v486, %v647
          %v649 = vpop.f32.mrb[0].mxu0
          %650 = vmatprep.mubr.f32.mxu0 0.0
          %651 = vmatmul.mubr.f32.gmra.mrb[0].mxu0 %v517
          %v652 = vpop.f32.mrb[0].mxu0
          %v653 = vadd.f32 %v486, %v652
          %v654 = vpop.f32.mrb[0].mxu0
          %655 = vmatprep.mubr.f32.mxu0 0.0
          %656 = vmatmul.mubr.f32.gmra.mrb[0].mxu0 %v520
          %v657 = vpop.f32.mrb[0].mxu0
          %v658 = vadd.f32 %v486, %v657
          %v659 = vpop.f32.mrb[0].mxu0
          %660 = vmatprep.mubr.f32.mxu0 0.0
          %661 = vmatmul.mubr.f32.gmra.mrb[0].mxu0 %v523
          %v662 = vpop.f32.mrb[0].mxu0
          %v663 = vadd.f32 %v486, %v662
          %v664 = vpop.f32.mrb[0].mxu0
          %665 = vmatprep.mubr.f32.mxu0 0.0
          %666 = vmatmul.mubr.f32.gmra.mrb[0].mxu0 %v526
          %v667 = vpop.f32.mrb[0].mxu0
          %v668 = vadd.f32 %v486, %v667
          %v669 = vpop.f32.mrb[0].mxu0
          %670 = vmatprep.mubr.f32.mxu0 0.0
          %671 = vmatmul.mubr.f32.gmra.mrb[0].mxu0 %v529
          %v672 = vpop.f32.mrb[0].mxu0
          %v673 = vadd.f32 %v486, %v672
          %v674 = vpop.f32.mrb[0].mxu0
          %675 = vmatprep.mubr.f32.mxu0 0.0
          %676 = vmatmul.mubr.f32.gmra.mrb[0].mxu0 %v532
          %v677 = vpop.f32.mrb[0].mxu0
          %v678 = vadd.f32 %v486, %v677
          %v679 = vpop.f32.mrb[0].mxu0
          %680 = vmatprep.mubr.f32.mxu0 0.0
          %681 = vmatmul.mubr.f32.gmra.mrb[0].mxu0 %v535
          %v682 = vpop.f32.mrb[0].mxu0
          %v683 = vadd.f32 %v486, %v682
          %v684 = vpop.f32.mrb[0].mxu0
          %685 = vdwg.mxu0
          %v686 = vmax.f32 %v608, 0.0
          %v687 = vmax.f32 %v613, 0.0
          %v688 = vmax.f32 %v618, 0.0
          %v689 = vmax.f32 %v623, 0.0
          %v690 = vmax.f32 %v628, 0.0
          %v691 = vmax.f32 %v633, 0.0
          %v692 = vmax.f32 %v638, 0.0
          %v693 = vmax.f32 %v643, 0.0
          %v694 = vmax.f32 %v648, 0.0
          %v695 = vmax.f32 %v653, 0.0
          %v696 = vmax.f32 %v658, 0.0
          %v697 = vmax.f32 %v663, 0.0
          %v698 = vmax.f32 %v668, 0.0
          %v699 = vmax.f32 %v673, 0.0
          %v700 = vmax.f32 %v678, 0.0
          %v701 = vmax.f32 %v683, 0.0
          %v702 = vmax.f32 %v686, %v690
          %v703 = vmax.f32 %v687, %v691
          %v704 = vmax.f32 %v688, %v692
          %v705 = vmax.f32 %v689, %v693
          %v706 = vmax.f32 %v694, %v698
          %v707 = vmax.f32 %v695, %v699
          %v708 = vmax.f32 %v696, %v700
          %v709 = vmax.f32 %v697, %v701
          %vm710 = vcmask 130048
          %711 = vst.msk [vmem:[#allocation4] sm:$0xff] %vm710, %v702
          %712 = vst.msk [vmem:[#allocation4 + $0x8] sm:$0xff] %vm710, %v703
          %713 = vst.msk [vmem:[#allocation4 + $0x10] sm:$0xff] %vm710, %v704
          %714 = vst.msk [vmem:[#allocation4 + $0x18] sm:$0xff] %vm710, %v705
          %715 = vst.msk [vmem:[#allocation4 + $0x20] sm:$0xff] %vm710, %v706
          %716 = vst.msk [vmem:[#allocation4 + $0x28] sm:$0xff] %vm710, %v707
          %717 = vst.msk [vmem:[#allocation4 + $0x30] sm:$0xff] %vm710, %v708
          %718 = vst.msk [vmem:[#allocation4 + $0x38] sm:$0xff] %vm710, %v709
          %v719 = vld [vmem:[#allocation4] ss:$2 sm:$0xff]
          %s720 = scalar_lea.vmem [#allocation4], 16
          %v721 = vld [vmem:[%s720] ss:$2 sm:$0xff]
          %s722 = scalar_lea.vmem [#allocation4], 32
          %v723 = vld [vmem:[%s722] ss:$2 sm:$0xff]
          %s724 = scalar_lea.vmem [#allocation4], 48
          %v725 = vld [vmem:[%s724] ss:$2 sm:$0xff]
          %s726 = scalar_lea.vmem [#allocation4], 1
          %v727 = vld [vmem:[%s726] ss:$2 sm:$0xff]
          %s728 = scalar_lea.vmem [#allocation4], 17
          %v729 = vld [vmem:[%s728] ss:$2 sm:$0xff]
          %s730 = scalar_lea.vmem [#allocation4], 33
          %v731 = vld [vmem:[%s730] ss:$2 sm:$0xff]
          %s732 = scalar_lea.vmem [#allocation4], 49
          %v733 = vld [vmem:[%s732] ss:$2 sm:$0xff]
          %v734 = vmax.f32 %v719, %v727
          %v735 = vmax.f32 %v721, %v729
          %v736 = vmax.f32 %v723, %v731
          %v737 = vmax.f32 %v725, %v733
          %s738 = scalar_lea.vmem [#allocation4], 2
          %v739 = vld [vmem:[%s738] ss:$2 sm:$0xff]
          %s740 = scalar_lea.vmem [#allocation4], 18
          %v741 = vld [vmem:[%s740] ss:$2 sm:$0x7f]
          %s742 = scalar_lea.vmem [#allocation4], 34
          %v743 = vld [vmem:[%s742] ss:$2 sm:$0xff]
          %s744 = scalar_lea.vmem [#allocation4], 50
          %v745 = vld [vmem:[%s744] ss:$2 sm:$0x7f]
          %s746 = scalar_lea.vmem [#allocation4], 3
          %v747 = vld [vmem:[%s746] ss:$2 sm:$0xff]
          %s748 = scalar_lea.vmem [#allocation4], 19
          %v749 = vld [vmem:[%s748] ss:$2 sm:$0x7f]
          %s750 = scalar_lea.vmem [#allocation4], 35
          %v751 = vld [vmem:[%s750] ss:$2 sm:$0xff]
          %s752 = scalar_lea.vmem [#allocation4], 51
          %v753 = vld [vmem:[%s752] ss:$2 sm:$0x7f]
          %v754 = vmax.f32 %v739, %v747
          %v755 = vmax.f32 %v741, %v749
          %v756 = vmax.f32 %v743, %v751
          %v757 = vmax.f32 %v745, %v753
          %s758 = smul.u32 %s458, 2
          %s759 = sadd.s32 %s758, 1
          %764 = vrot.lane.b32.xlu0 %v734, 16
          %v765 = vpop.permute.xlu0 %764
          %766 = vrot.lane.b32.xlu0 %v735, 16
          %v767 = vpop.permute.xlu0 %766
          %768 = vrot.lane.b32.xlu0 %v736, 16
          %v769 = vpop.permute.xlu0 %768
          %770 = vrot.lane.b32.xlu0 %v737, 16
          %v771 = vpop.permute.xlu0 %770
          %s776 = smul.u32 %s759, 16
          %s777 = scalar_lea.vmem [#allocation2], %s776
          %vm778 = vcmask 261248
          %779 = vst.msk [vmem:[%s777] sm:$0xff] %vm778, %v765
          %780 = vst.msk [vmem:[%s777 + $0x8] sm:$0xff] %vm778, %v767
          %781 = vst.msk [vmem:[%s777 + $0x10] sm:$0xff] %vm778, %v769
          %782 = vst.msk [vmem:[%s777 + $0x18] sm:$0xff] %vm778, %v771
          %783 = vst.msk [vmem:[%s777 + $0x1] sm:$0xff] %vm710, %v734
          %vm784 = vcmask 129024
          %785 = vst.msk [vmem:[%s777 + $0x9] sm:$0x7f] %vm784, %v735
          %786 = vst.msk [vmem:[%s777 + $0x11] sm:$0xff] %vm710, %v736
          %787 = vst.msk [vmem:[%s777 + $0x19] sm:$0x7f] %vm784, %v737
          %792 = vrot.lane.b32.xlu0 %v754, 32
          %v793 = vpop.permute.xlu0 %792
          %794 = vrot.lane.b32.xlu0 %v755, 32
          %v795 = vpop.permute.xlu0 %794
          %796 = vrot.lane.b32.xlu0 %v756, 32
          %v797 = vpop.permute.xlu0 %796
          %798 = vrot.lane.b32.xlu0 %v757, 32
          %v799 = vpop.permute.xlu0 %798
          %vm804 = vcmask 392448
          %805 = vst.msk [vmem:[%s777] sm:$0xff] %vm804, %v793
          %vm806 = vcmask 391424
          %807 = vst.msk [vmem:[%s777 + $0x8] sm:$0x7f] %vm806, %v795
          %808 = vst.msk [vmem:[%s777 + $0x10] sm:$0xff] %vm804, %v797
          %809 = vst.msk [vmem:[%s777 + $0x18] sm:$0x7f] %vm806, %v799
        $region69: #{tpu_custom_call.1} parent=63 // loop_footer
          %s462 = sadd.s32 1, %s458
        $region70: #{tpu_custom_call.1} parent=63 // loop_footer_branch
          %457 = sbr.rel target = $region66
        $region71: #{tpu_custom_call.1} parent=63 // loop_exit
          _
        %v810 = vld [vmem:[%s4] sm:$0x1]
        loop: start=0, step=1, limit=2
        $region72: #{tpu_custom_call.1} parent=63 // loop_pre_header
          _
        $region73: #{tpu_custom_call.1} parent=63 // loop_header
          %s812 = sphi 0, %s816
          %p813 = scmp.ge.s32.totalorder %s812, 2
        $region74: #{tpu_custom_call.1} parent=63 // loop_header_branch
          %815 = sbr.rel (%p813) target = $region78
        $region75: #{tpu_custom_call.1} parent=63 // loop_body
          %s817 = smul.u32 %s812, 8
          %s818 = smul.u32 %s817, 16
          %s819 = scalar_lea.vmem [#allocation2], %s818
          %v820 = vld [vmem:[%s819] sm:$0xff]
          %v821 = vld [vmem:[%s819 + $0x8] sm:$0xff]
          %v822 = vld [vmem:[%s819 + $0x10] sm:$0xff]
          %v823 = vld [vmem:[%s819 + $0x18] sm:$0xff]
          %v824 = vld [vmem:[%s819 + $0x20] sm:$0xff]
          %v825 = vld [vmem:[%s819 + $0x28] sm:$0xff]
          %v826 = vld [vmem:[%s819 + $0x30] sm:$0xff]
          %v827 = vld [vmem:[%s819 + $0x38] sm:$0xff]
          %v828 = vld [vmem:[%s819 + $0x40] sm:$0xff]
          %v829 = vld [vmem:[%s819 + $0x48] sm:$0xff]
          %v830 = vld [vmem:[%s819 + $0x50] sm:$0xff]
          %v831 = vld [vmem:[%s819 + $0x58] sm:$0xff]
          %v832 = vld [vmem:[%s819 + $0x60] sm:$0xff]
          %v833 = vld [vmem:[%s819 + $0x68] sm:$0xff]
          %v834 = vld [vmem:[%s819 + $0x70] sm:$0xff]
          %v835 = vld [vmem:[%s819 + $0x78] sm:$0xff]
          %v836 = vld [vmem:[%s3] sm:$0xff]
          %v837 = vld [vmem:[%s3 + $0x8] sm:$0xff]
          %v838 = vld [vmem:[%s3 + $0x10] sm:$0xff]
          %v839 = vld [vmem:[%s3 + $0x18] sm:$0xff]
          %v840 = vld [vmem:[%s3 + $0x20] sm:$0xff]
          %v841 = vld [vmem:[%s3 + $0x28] sm:$0xff]
          %s842 = sadd.s32 %s817, 1
          %s843 = smul.u32 %s842, 16
          %s844 = scalar_lea.vmem [#allocation2], %s843
          %v845 = vld [vmem:[%s844] sm:$0xff]
          %v846 = vld [vmem:[%s844 + $0x8] sm:$0xff]
          %v847 = vld [vmem:[%s844 + $0x10] sm:$0xff]
          %v848 = vld [vmem:[%s844 + $0x18] sm:$0xff]
          %v849 = vld [vmem:[%s844 + $0x20] sm:$0xff]
          %v850 = vld [vmem:[%s844 + $0x28] sm:$0xff]
          %v851 = vld [vmem:[%s844 + $0x30] sm:$0xff]
          %v852 = vld [vmem:[%s844 + $0x38] sm:$0xff]
          %v853 = vld [vmem:[%s844 + $0x40] sm:$0xff]
          %v854 = vld [vmem:[%s844 + $0x48] sm:$0xff]
          %v855 = vld [vmem:[%s844 + $0x50] sm:$0xff]
          %v856 = vld [vmem:[%s844 + $0x58] sm:$0xff]
          %v857 = vld [vmem:[%s844 + $0x60] sm:$0xff]
          %v858 = vld [vmem:[%s844 + $0x68] sm:$0xff]
          %v859 = vld [vmem:[%s844 + $0x70] sm:$0xff]
          %v860 = vld [vmem:[%s844 + $0x78] sm:$0xff]
          %s861 = scalar_lea.vmem %s3, 48
          %v862 = vld [vmem:[%s861] sm:$0xff]
          %v863 = vld [vmem:[%s861 + $0x8] sm:$0xff]
          %v864 = vld [vmem:[%s861 + $0x10] sm:$0xff]
          %v865 = vld [vmem:[%s861 + $0x18] sm:$0xff]
          %v866 = vld [vmem:[%s861 + $0x20] sm:$0xff]
          %v867 = vld [vmem:[%s861 + $0x28] sm:$0xff]
          %v869 = vsel %vm384, %v845, 0
          %v872 = vsel %vm384, %v846, 0
          %v875 = vsel %vm384, %v847, 0
          %v878 = vsel %vm384, %v848, 0
          %v881 = vsel %vm384, %v849, 0
          %v884 = vsel %vm384, %v850, 0
          %v887 = vsel %vm384, %v851, 0
          %v890 = vsel %vm384, %v852, 0
          %v893 = vsel %vm384, %v853, 0
          %v896 = vsel %vm384, %v854, 0
          %v899 = vsel %vm384, %v855, 0
          %v902 = vsel %vm384, %v856, 0
          %v905 = vsel %vm384, %v857, 0
          %v908 = vsel %vm384, %v858, 0
          %v911 = vsel %vm384, %v859, 0
          %v914 = vsel %vm384, %v860, 0
          %916 = vmatprep.subr.mxu0 0.0
          %917 = vmatpush1.msra.mxu0 %v862
          %918 = vmatprep.subr.mxu0 0.0
          %919 = vmatpush1.msra.mxu0 %v863
          %920 = vmatprep.subr.mxu0 0.0
          %921 = vmatpush1.msra.mxu0 %v864
          %922 = vmatprep.subr.mxu0 0.0
          %923 = vmatpush1.msra.mxu0 %v865
          %924 = vmatprep.subr.mxu0 0.0
          %925 = vmatpush1.msra.mxu0 %v866
          %926 = vmatprep.subr.mxu0 0.0
          %927 = vmatpush1.msra.mxu0 %v867
          %928 = vmatprep.subr.mxu0 0.0
          %929 = vmatpush1.msra.mxu0 0.0
          %930 = vmatprep.subr.mxu0 0.0
          %931 = vmatpush1.msra.mxu0 0.0
          %932 = vmatprep.subr.mxu0 0.0
          %933 = vmatpush1.msra.mxu0 0.0
          %934 = vmatprep.subr.mxu0 0.0
          %935 = vmatpush1.msra.mxu0 0.0
          %936 = vmatprep.subr.mxu0 0.0
          %937 = vmatpush1.msra.mxu0 0.0
          %938 = vmatprep.subr.mxu0 0.0
          %939 = vmatpush1.msra.mxu0 0.0
          %940 = vmatprep.subr.mxu0 0.0
          %941 = vmatpush1.msra.mxu0 0.0
          %942 = vmatprep.subr.mxu0 0.0
          %943 = vmatpush1.msra.mxu0 0.0
          %944 = vmatprep.subr.mxu0 0.0
          %945 = vmatpush1.msra.mxu0 0.0
          %946 = vmatprep.subr.mxu0 0.0
          %947 = vmatpush1.msra.mxu0 0.0
          %948 = vmatprep.subr.mxu0 0.0
          %949 = vmatpush1.msra.mxu0 0.0
          %950 = vmatprep.subr.mxu0 0.0
          %951 = vmatpush1.msra.mxu0 0.0
          %952 = vmatprep.subr.mxu0 0.0
          %953 = vmatpush1.msra.mxu0 0.0
          %954 = vmatprep.subr.mxu0 0.0
          %955 = vmatpush1.msra.mxu0 0.0
          %956 = vmatprep.subr.mxu0 0.0
          %957 = vmatpush1.msra.mxu0 0.0
          %958 = vmatprep.subr.mxu0 0.0
          %959 = vmatpush1.msra.mxu0 0.0
          %960 = vmatprep.subr.mxu0 0.0
          %961 = vmatpush1.msra.mxu0 0.0
          %962 = vmatprep.subr.mxu0 0.0
          %963 = vmatpush1.msra.mxu0 0.0
          %964 = vmatprep.subr.mxu0 0.0
          %965 = vmatpush1.msra.mxu0 0.0
          %966 = vmatprep.subr.mxu0 0.0
          %967 = vmatpush1.msra.mxu0 0.0
          %968 = vmatprep.subr.mxu0 0.0
          %969 = vmatpush1.msra.mxu0 0.0
          %970 = vmatprep.subr.mxu0 0.0
          %971 = vmatpush1.msra.mxu0 0.0
          %972 = vmatprep.subr.mxu0 0.0
          %973 = vmatpush1.msra.mxu0 0.0
          %974 = vmatprep.subr.mxu0 0.0
          %975 = vmatpush1.msra.mxu0 0.0
          %976 = vmatprep.subr.mxu0 0.0
          %977 = vmatpush1.msra.mxu0 0.0
          %978 = vmatprep.subr.mxu0 0.0
          %979 = vmatpush1.msra.mxu0 0.0
          %980 = vmatprep.mubr.f32.mxu0 0.0
          %981 = vmatmul.mubr.f32.gmra.mrb[0].mxu0 %v869
          %v982 = vpop.f32.mrb[0].mxu0
          %v983 = vadd.f32 0.0, %v982
          %v984 = vpop.f32.mrb[0].mxu0
          %985 = vmatprep.mubr.f32.mxu0 0.0
          %986 = vmatmul.mubr.f32.gmra.mrb[0].mxu0 %v872
          %v987 = vpop.f32.mrb[0].mxu0
          %v988 = vadd.f32 0.0, %v987
          %v989 = vpop.f32.mrb[0].mxu0
          %990 = vmatprep.mubr.f32.mxu0 0.0
          %991 = vmatmul.mubr.f32.gmra.mrb[0].mxu0 %v875
          %v992 = vpop.f32.mrb[0].mxu0
          %v993 = vadd.f32 0.0, %v992
          %v994 = vpop.f32.mrb[0].mxu0
          %995 = vmatprep.mubr.f32.mxu0 0.0
          %996 = vmatmul.mubr.f32.gmra.mrb[0].mxu0 %v878
          %v997 = vpop.f32.mrb[0].mxu0
          %v998 = vadd.f32 0.0, %v997
          %v999 = vpop.f32.mrb[0].mxu0
          %1000 = vmatprep.mubr.f32.mxu0 0.0
          %1001 = vmatmul.mubr.f32.gmra.mrb[0].mxu0 %v881
          %v1002 = vpop.f32.mrb[0].mxu0
          %v1003 = vadd.f32 0.0, %v1002
          %v1004 = vpop.f32.mrb[0].mxu0
          %1005 = vmatprep.mubr.f32.mxu0 0.0
          %1006 = vmatmul.mubr.f32.gmra.mrb[0].mxu0 %v884
          %v1007 = vpop.f32.mrb[0].mxu0
          %v1008 = vadd.f32 0.0, %v1007
          %v1009 = vpop.f32.mrb[0].mxu0
          %1010 = vmatprep.mubr.f32.mxu0 0.0
          %1011 = vmatmul.mubr.f32.gmra.mrb[0].mxu0 %v887
          %v1012 = vpop.f32.mrb[0].mxu0
          %v1013 = vadd.f32 0.0, %v1012
          %v1014 = vpop.f32.mrb[0].mxu0
          %1015 = vmatprep.mubr.f32.mxu0 0.0
          %1016 = vmatmul.mubr.f32.gmra.mrb[0].mxu0 %v890
          %v1017 = vpop.f32.mrb[0].mxu0
          %v1018 = vadd.f32 0.0, %v1017
          %v1019 = vpop.f32.mrb[0].mxu0
          %1020 = vmatprep.mubr.f32.mxu0 0.0
          %1021 = vmatmul.mubr.f32.gmra.mrb[0].mxu0 %v893
          %v1022 = vpop.f32.mrb[0].mxu0
          %v1023 = vadd.f32 0.0, %v1022
          %v1024 = vpop.f32.mrb[0].mxu0
          %1025 = vmatprep.mubr.f32.mxu0 0.0
          %1026 = vmatmul.mubr.f32.gmra.mrb[0].mxu0 %v896
          %v1027 = vpop.f32.mrb[0].mxu0
          %v1028 = vadd.f32 0.0, %v1027
          %v1029 = vpop.f32.mrb[0].mxu0
          %1030 = vmatprep.mubr.f32.mxu0 0.0
          %1031 = vmatmul.mubr.f32.gmra.mrb[0].mxu0 %v899
          %v1032 = vpop.f32.mrb[0].mxu0
          %v1033 = vadd.f32 0.0, %v1032
          %v1034 = vpop.f32.mrb[0].mxu0
          %1035 = vmatprep.mubr.f32.mxu0 0.0
          %1036 = vmatmul.mubr.f32.gmra.mrb[0].mxu0 %v902
          %v1037 = vpop.f32.mrb[0].mxu0
          %v1038 = vadd.f32 0.0, %v1037
          %v1039 = vpop.f32.mrb[0].mxu0
          %1040 = vmatprep.mubr.f32.mxu0 0.0
          %1041 = vmatmul.mubr.f32.gmra.mrb[0].mxu0 %v905
          %v1042 = vpop.f32.mrb[0].mxu0
          %v1043 = vadd.f32 0.0, %v1042
          %v1044 = vpop.f32.mrb[0].mxu0
          %1045 = vmatprep.mubr.f32.mxu0 0.0
          %1046 = vmatmul.mubr.f32.gmra.mrb[0].mxu0 %v908
          %v1047 = vpop.f32.mrb[0].mxu0
          %v1048 = vadd.f32 0.0, %v1047
          %v1049 = vpop.f32.mrb[0].mxu0
          %1050 = vmatprep.mubr.f32.mxu0 0.0
          %1051 = vmatmul.mubr.f32.gmra.mrb[0].mxu0 %v911
          %v1052 = vpop.f32.mrb[0].mxu0
          %v1053 = vadd.f32 0.0, %v1052
          %v1054 = vpop.f32.mrb[0].mxu0
          %1055 = vmatprep.mubr.f32.mxu0 0.0
          %1056 = vmatmul.mubr.f32.gmra.mrb[0].mxu0 %v914
          %v1057 = vpop.f32.mrb[0].mxu0
          %v1058 = vadd.f32 0.0, %v1057
          %v1059 = vpop.f32.mrb[0].mxu0
          %1060 = vdwg.mxu0
          %v1062 = vsel %vm384, %v820, 0
          %v1065 = vsel %vm384, %v821, 0
          %v1068 = vsel %vm384, %v822, 0
          %v1071 = vsel %vm384, %v823, 0
          %v1074 = vsel %vm384, %v824, 0
          %v1077 = vsel %vm384, %v825, 0
          %v1080 = vsel %vm384, %v826, 0
          %v1083 = vsel %vm384, %v827, 0
          %v1086 = vsel %vm384, %v828, 0
          %v1089 = vsel %vm384, %v829, 0
          %v1092 = vsel %vm384, %v830, 0
          %v1095 = vsel %vm384, %v831, 0
          %v1098 = vsel %vm384, %v832, 0
          %v1101 = vsel %vm384, %v833, 0
          %v1104 = vsel %vm384, %v834, 0
          %v1107 = vsel %vm384, %v835, 0
          %1109 = vmatprep.subr.mxu0 0.0
          %1110 = vmatpush1.msra.mxu0 %v836
          %1111 = vmatprep.subr.mxu0 0.0
          %1112 = vmatpush1.msra.mxu0 %v837
          %1113 = vmatprep.subr.mxu0 0.0
          %1114 = vmatpush1.msra.mxu0 %v838
          %1115 = vmatprep.subr.mxu0 0.0
          %1116 = vmatpush1.msra.mxu0 %v839
          %1117 = vmatprep.subr.mxu0 0.0
          %1118 = vmatpush1.msra.mxu0 %v840
          %1119 = vmatprep.subr.mxu0 0.0
          %1120 = vmatpush1.msra.mxu0 %v841
          %1121 = vmatprep.subr.mxu0 0.0
          %1122 = vmatpush1.msra.mxu0 0.0
          %1123 = vmatprep.subr.mxu0 0.0
          %1124 = vmatpush1.msra.mxu0 0.0
          %1125 = vmatprep.subr.mxu0 0.0
          %1126 = vmatpush1.msra.mxu0 0.0
          %1127 = vmatprep.subr.mxu0 0.0
          %1128 = vmatpush1.msra.mxu0 0.0
          %1129 = vmatprep.subr.mxu0 0.0
          %1130 = vmatpush1.msra.mxu0 0.0
          %1131 = vmatprep.subr.mxu0 0.0
          %1132 = vmatpush1.msra.mxu0 0.0
          %1133 = vmatprep.subr.mxu0 0.0
          %1134 = vmatpush1.msra.mxu0 0.0
          %1135 = vmatprep.subr.mxu0 0.0
          %1136 = vmatpush1.msra.mxu0 0.0
          %1137 = vmatprep.subr.mxu0 0.0
          %1138 = vmatpush1.msra.mxu0 0.0
          %1139 = vmatprep.subr.mxu0 0.0
          %1140 = vmatpush1.msra.mxu0 0.0
          %1141 = vmatprep.subr.mxu0 0.0
          %1142 = vmatpush1.msra.mxu0 0.0
          %1143 = vmatprep.subr.mxu0 0.0
          %1144 = vmatpush1.msra.mxu0 0.0
          %1145 = vmatprep.subr.mxu0 0.0
          %1146 = vmatpush1.msra.mxu0 0.0
          %1147 = vmatprep.subr.mxu0 0.0
          %1148 = vmatpush1.msra.mxu0 0.0
          %1149 = vmatprep.subr.mxu0 0.0
          %1150 = vmatpush1.msra.mxu0 0.0
          %1151 = vmatprep.subr.mxu0 0.0
          %1152 = vmatpush1.msra.mxu0 0.0
          %1153 = vmatprep.subr.mxu0 0.0
          %1154 = vmatpush1.msra.mxu0 0.0
          %1155 = vmatprep.subr.mxu0 0.0
          %1156 = vmatpush1.msra.mxu0 0.0
          %1157 = vmatprep.subr.mxu0 0.0
          %1158 = vmatpush1.msra.mxu0 0.0
          %1159 = vmatprep.subr.mxu0 0.0
          %1160 = vmatpush1.msra.mxu0 0.0
          %1161 = vmatprep.subr.mxu0 0.0
          %1162 = vmatpush1.msra.mxu0 0.0
          %1163 = vmatprep.subr.mxu0 0.0
          %1164 = vmatpush1.msra.mxu0 0.0
          %1165 = vmatprep.subr.mxu0 0.0
          %1166 = vmatpush1.msra.mxu0 0.0
          %1167 = vmatprep.subr.mxu0 0.0
          %1168 = vmatpush1.msra.mxu0 0.0
          %1169 = vmatprep.subr.mxu0 0.0
          %1170 = vmatpush1.msra.mxu0 0.0
          %1171 = vmatprep.subr.mxu0 0.0
          %1172 = vmatpush1.msra.mxu0 0.0
          %1173 = vmatprep.mubr.f32.mxu0 0.0
          %1174 = vmatmul.mubr.f32.gmra.mrb[0].mxu0 %v1062
          %v1175 = vpop.f32.mrb[0].mxu0
          %v1176 = vadd.f32 %v983, %v1175
          %v1177 = vpop.f32.mrb[0].mxu0
          %1178 = vmatprep.mubr.f32.mxu0 0.0
          %1179 = vmatmul.mubr.f32.gmra.mrb[0].mxu0 %v1065
          %v1180 = vpop.f32.mrb[0].mxu0
          %v1181 = vadd.f32 %v988, %v1180
          %v1182 = vpop.f32.mrb[0].mxu0
          %1183 = vmatprep.mubr.f32.mxu0 0.0
          %1184 = vmatmul.mubr.f32.gmra.mrb[0].mxu0 %v1068
          %v1185 = vpop.f32.mrb[0].mxu0
          %v1186 = vadd.f32 %v993, %v1185
          %v1187 = vpop.f32.mrb[0].mxu0
          %1188 = vmatprep.mubr.f32.mxu0 0.0
          %1189 = vmatmul.mubr.f32.gmra.mrb[0].mxu0 %v1071
          %v1190 = vpop.f32.mrb[0].mxu0
          %v1191 = vadd.f32 %v998, %v1190
          %v1192 = vpop.f32.mrb[0].mxu0
          %1193 = vmatprep.mubr.f32.mxu0 0.0
          %1194 = vmatmul.mubr.f32.gmra.mrb[0].mxu0 %v1074
          %v1195 = vpop.f32.mrb[0].mxu0
          %v1196 = vadd.f32 %v1003, %v1195
          %v1197 = vpop.f32.mrb[0].mxu0
          %1198 = vmatprep.mubr.f32.mxu0 0.0
          %1199 = vmatmul.mubr.f32.gmra.mrb[0].mxu0 %v1077
          %v1200 = vpop.f32.mrb[0].mxu0
          %v1201 = vadd.f32 %v1008, %v1200
          %v1202 = vpop.f32.mrb[0].mxu0
          %1203 = vmatprep.mubr.f32.mxu0 0.0
          %1204 = vmatmul.mubr.f32.gmra.mrb[0].mxu0 %v1080
          %v1205 = vpop.f32.mrb[0].mxu0
          %v1206 = vadd.f32 %v1013, %v1205
          %v1207 = vpop.f32.mrb[0].mxu0
          %1208 = vmatprep.mubr.f32.mxu0 0.0
          %1209 = vmatmul.mubr.f32.gmra.mrb[0].mxu0 %v1083
          %v1210 = vpop.f32.mrb[0].mxu0
          %v1211 = vadd.f32 %v1018, %v1210
          %v1212 = vpop.f32.mrb[0].mxu0
          %1213 = vmatprep.mubr.f32.mxu0 0.0
          %1214 = vmatmul.mubr.f32.gmra.mrb[0].mxu0 %v1086
          %v1215 = vpop.f32.mrb[0].mxu0
          %v1216 = vadd.f32 %v1023, %v1215
          %v1217 = vpop.f32.mrb[0].mxu0
          %1218 = vmatprep.mubr.f32.mxu0 0.0
          %1219 = vmatmul.mubr.f32.gmra.mrb[0].mxu0 %v1089
          %v1220 = vpop.f32.mrb[0].mxu0
          %v1221 = vadd.f32 %v1028, %v1220
          %v1222 = vpop.f32.mrb[0].mxu0
          %1223 = vmatprep.mubr.f32.mxu0 0.0
          %1224 = vmatmul.mubr.f32.gmra.mrb[0].mxu0 %v1092
          %v1225 = vpop.f32.mrb[0].mxu0
          %v1226 = vadd.f32 %v1033, %v1225
          %v1227 = vpop.f32.mrb[0].mxu0
          %1228 = vmatprep.mubr.f32.mxu0 0.0
          %1229 = vmatmul.mubr.f32.gmra.mrb[0].mxu0 %v1095
          %v1230 = vpop.f32.mrb[0].mxu0
          %v1231 = vadd.f32 %v1038, %v1230
          %v1232 = vpop.f32.mrb[0].mxu0
          %1233 = vmatprep.mubr.f32.mxu0 0.0
          %1234 = vmatmul.mubr.f32.gmra.mrb[0].mxu0 %v1098
          %v1235 = vpop.f32.mrb[0].mxu0
          %v1236 = vadd.f32 %v1043, %v1235
          %v1237 = vpop.f32.mrb[0].mxu0
          %1238 = vmatprep.mubr.f32.mxu0 0.0
          %1239 = vmatmul.mubr.f32.gmra.mrb[0].mxu0 %v1101
          %v1240 = vpop.f32.mrb[0].mxu0
          %v1241 = vadd.f32 %v1048, %v1240
          %v1242 = vpop.f32.mrb[0].mxu0
          %1243 = vmatprep.mubr.f32.mxu0 0.0
          %1244 = vmatmul.mubr.f32.gmra.mrb[0].mxu0 %v1104
          %v1245 = vpop.f32.mrb[0].mxu0
          %v1246 = vadd.f32 %v1053, %v1245
          %v1247 = vpop.f32.mrb[0].mxu0
          %1248 = vmatprep.mubr.f32.mxu0 0.0
          %1249 = vmatmul.mubr.f32.gmra.mrb[0].mxu0 %v1107
          %v1250 = vpop.f32.mrb[0].mxu0
          %v1251 = vadd.f32 %v1058, %v1250
          %v1252 = vpop.f32.mrb[0].mxu0
          %1253 = vdwg.mxu0
          %s1254 = sadd.s32 %s817, 2
          %s1255 = smul.u32 %s1254, 16
          %s1256 = scalar_lea.vmem [#allocation2], %s1255
          %v1257 = vld [vmem:[%s1256] sm:$0xff]
          %v1258 = vld [vmem:[%s1256 + $0x8] sm:$0xff]
          %v1259 = vld [vmem:[%s1256 + $0x10] sm:$0xff]
          %v1260 = vld [vmem:[%s1256 + $0x18] sm:$0xff]
          %v1261 = vld [vmem:[%s1256 + $0x20] sm:$0xff]
          %v1262 = vld [vmem:[%s1256 + $0x28] sm:$0xff]
          %v1263 = vld [vmem:[%s1256 + $0x30] sm:$0xff]
          %v1264 = vld [vmem:[%s1256 + $0x38] sm:$0xff]
          %v1265 = vld [vmem:[%s1256 + $0x40] sm:$0xff]
          %v1266 = vld [vmem:[%s1256 + $0x48] sm:$0xff]
          %v1267 = vld [vmem:[%s1256 + $0x50] sm:$0xff]
          %v1268 = vld [vmem:[%s1256 + $0x58] sm:$0xff]
          %v1269 = vld [vmem:[%s1256 + $0x60] sm:$0xff]
          %v1270 = vld [vmem:[%s1256 + $0x68] sm:$0xff]
          %v1271 = vld [vmem:[%s1256 + $0x70] sm:$0xff]
          %v1272 = vld [vmem:[%s1256 + $0x78] sm:$0xff]
          %s1273 = scalar_lea.vmem %s3, 96
          %v1274 = vld [vmem:[%s1273] sm:$0xff]
          %v1275 = vld [vmem:[%s1273 + $0x8] sm:$0xff]
          %v1276 = vld [vmem:[%s1273 + $0x10] sm:$0xff]
          %v1277 = vld [vmem:[%s1273 + $0x18] sm:$0xff]
          %v1278 = vld [vmem:[%s1273 + $0x20] sm:$0xff]
          %v1279 = vld [vmem:[%s1273 + $0x28] sm:$0xff]
          %v1281 = vsel %vm384, %v1257, 0
          %v1284 = vsel %vm384, %v1258, 0
          %v1287 = vsel %vm384, %v1259, 0
          %v1290 = vsel %vm384, %v1260, 0
          %v1293 = vsel %vm384, %v1261, 0
          %v1296 = vsel %vm384, %v1262, 0
          %v1299 = vsel %vm384, %v1263, 0
          %v1302 = vsel %vm384, %v1264, 0
          %v1305 = vsel %vm384, %v1265, 0
          %v1308 = vsel %vm384, %v1266, 0
          %v1311 = vsel %vm384, %v1267, 0
          %v1314 = vsel %vm384, %v1268, 0
          %v1317 = vsel %vm384, %v1269, 0
          %v1320 = vsel %vm384, %v1270, 0
          %v1323 = vsel %vm384, %v1271, 0
          %v1326 = vsel %vm384, %v1272, 0
          %1328 = vmatprep.subr.mxu0 0.0
          %1329 = vmatpush1.msra.mxu0 %v1274
          %1330 = vmatprep.subr.mxu0 0.0
          %1331 = vmatpush1.msra.mxu0 %v1275
          %1332 = vmatprep.subr.mxu0 0.0
          %1333 = vmatpush1.msra.mxu0 %v1276
          %1334 = vmatprep.subr.mxu0 0.0
          %1335 = vmatpush1.msra.mxu0 %v1277
          %1336 = vmatprep.subr.mxu0 0.0
          %1337 = vmatpush1.msra.mxu0 %v1278
          %1338 = vmatprep.subr.mxu0 0.0
          %1339 = vmatpush1.msra.mxu0 %v1279
          %1340 = vmatprep.subr.mxu0 0.0
          %1341 = vmatpush1.msra.mxu0 0.0
          %1342 = vmatprep.subr.mxu0 0.0
          %1343 = vmatpush1.msra.mxu0 0.0
          %1344 = vmatprep.subr.mxu0 0.0
          %1345 = vmatpush1.msra.mxu0 0.0
          %1346 = vmatprep.subr.mxu0 0.0
          %1347 = vmatpush1.msra.mxu0 0.0
          %1348 = vmatprep.subr.mxu0 0.0
          %1349 = vmatpush1.msra.mxu0 0.0
          %1350 = vmatprep.subr.mxu0 0.0
          %1351 = vmatpush1.msra.mxu0 0.0
          %1352 = vmatprep.subr.mxu0 0.0
          %1353 = vmatpush1.msra.mxu0 0.0
          %1354 = vmatprep.subr.mxu0 0.0
          %1355 = vmatpush1.msra.mxu0 0.0
          %1356 = vmatprep.subr.mxu0 0.0
          %1357 = vmatpush1.msra.mxu0 0.0
          %1358 = vmatprep.subr.mxu0 0.0
          %1359 = vmatpush1.msra.mxu0 0.0
          %1360 = vmatprep.subr.mxu0 0.0
          %1361 = vmatpush1.msra.mxu0 0.0
          %1362 = vmatprep.subr.mxu0 0.0
          %1363 = vmatpush1.msra.mxu0 0.0
          %1364 = vmatprep.subr.mxu0 0.0
          %1365 = vmatpush1.msra.mxu0 0.0
          %1366 = vmatprep.subr.mxu0 0.0
          %1367 = vmatpush1.msra.mxu0 0.0
          %1368 = vmatprep.subr.mxu0 0.0
          %1369 = vmatpush1.msra.mxu0 0.0
          %1370 = vmatprep.subr.mxu0 0.0
          %1371 = vmatpush1.msra.mxu0 0.0
          %1372 = vmatprep.subr.mxu0 0.0
          %1373 = vmatpush1.msra.mxu0 0.0
          %1374 = vmatprep.subr.mxu0 0.0
          %1375 = vmatpush1.msra.mxu0 0.0
          %1376 = vmatprep.subr.mxu0 0.0
          %1377 = vmatpush1.msra.mxu0 0.0
          %1378 = vmatprep.subr.mxu0 0.0
          %1379 = vmatpush1.msra.mxu0 0.0
          %1380 = vmatprep.subr.mxu0 0.0
          %1381 = vmatpush1.msra.mxu0 0.0
          %1382 = vmatprep.subr.mxu0 0.0
          %1383 = vmatpush1.msra.mxu0 0.0
          %1384 = vmatprep.subr.mxu0 0.0
          %1385 = vmatpush1.msra.mxu0 0.0
          %1386 = vmatprep.subr.mxu0 0.0
          %1387 = vmatpush1.msra.mxu0 0.0
          %1388 = vmatprep.subr.mxu0 0.0
          %1389 = vmatpush1.msra.mxu0 0.0
          %1390 = vmatprep.subr.mxu0 0.0
          %1391 = vmatpush1.msra.mxu0 0.0
          %1392 = vmatprep.mubr.f32.mxu0 0.0
          %1393 = vmatmul.mubr.f32.gmra.mrb[0].mxu0 %v1281
          %v1394 = vpop.f32.mrb[0].mxu0
          %v1395 = vadd.f32 0.0, %v1394
          %v1396 = vpop.f32.mrb[0].mxu0
          %1397 = vmatprep.mubr.f32.mxu0 0.0
          %1398 = vmatmul.mubr.f32.gmra.mrb[0].mxu0 %v1284
          %v1399 = vpop.f32.mrb[0].mxu0
          %v1400 = vadd.f32 0.0, %v1399
          %v1401 = vpop.f32.mrb[0].mxu0
          %1402 = vmatprep.mubr.f32.mxu0 0.0
          %1403 = vmatmul.mubr.f32.gmra.mrb[0].mxu0 %v1287
          %v1404 = vpop.f32.mrb[0].mxu0
          %v1405 = vadd.f32 0.0, %v1404
          %v1406 = vpop.f32.mrb[0].mxu0
          %1407 = vmatprep.mubr.f32.mxu0 0.0
          %1408 = vmatmul.mubr.f32.gmra.mrb[0].mxu0 %v1290
          %v1409 = vpop.f32.mrb[0].mxu0
          %v1410 = vadd.f32 0.0, %v1409
          %v1411 = vpop.f32.mrb[0].mxu0
          %1412 = vmatprep.mubr.f32.mxu0 0.0
          %1413 = vmatmul.mubr.f32.gmra.mrb[0].mxu0 %v1293
          %v1414 = vpop.f32.mrb[0].mxu0
          %v1415 = vadd.f32 0.0, %v1414
          %v1416 = vpop.f32.mrb[0].mxu0
          %1417 = vmatprep.mubr.f32.mxu0 0.0
          %1418 = vmatmul.mubr.f32.gmra.mrb[0].mxu0 %v1296
          %v1419 = vpop.f32.mrb[0].mxu0
          %v1420 = vadd.f32 0.0, %v1419
          %v1421 = vpop.f32.mrb[0].mxu0
          %1422 = vmatprep.mubr.f32.mxu0 0.0
          %1423 = vmatmul.mubr.f32.gmra.mrb[0].mxu0 %v1299
          %v1424 = vpop.f32.mrb[0].mxu0
          %v1425 = vadd.f32 0.0, %v1424
          %v1426 = vpop.f32.mrb[0].mxu0
          %1427 = vmatprep.mubr.f32.mxu0 0.0
          %1428 = vmatmul.mubr.f32.gmra.mrb[0].mxu0 %v1302
          %v1429 = vpop.f32.mrb[0].mxu0
          %v1430 = vadd.f32 0.0, %v1429
          %v1431 = vpop.f32.mrb[0].mxu0
          %1432 = vmatprep.mubr.f32.mxu0 0.0
          %1433 = vmatmul.mubr.f32.gmra.mrb[0].mxu0 %v1305
          %v1434 = vpop.f32.mrb[0].mxu0
          %v1435 = vadd.f32 0.0, %v1434
          %v1436 = vpop.f32.mrb[0].mxu0
          %1437 = vmatprep.mubr.f32.mxu0 0.0
          %1438 = vmatmul.mubr.f32.gmra.mrb[0].mxu0 %v1308
          %v1439 = vpop.f32.mrb[0].mxu0
          %v1440 = vadd.f32 0.0, %v1439
          %v1441 = vpop.f32.mrb[0].mxu0
          %1442 = vmatprep.mubr.f32.mxu0 0.0
          %1443 = vmatmul.mubr.f32.gmra.mrb[0].mxu0 %v1311
          %v1444 = vpop.f32.mrb[0].mxu0
          %v1445 = vadd.f32 0.0, %v1444
          %v1446 = vpop.f32.mrb[0].mxu0
          %1447 = vmatprep.mubr.f32.mxu0 0.0
          %1448 = vmatmul.mubr.f32.gmra.mrb[0].mxu0 %v1314
          %v1449 = vpop.f32.mrb[0].mxu0
          %v1450 = vadd.f32 0.0, %v1449
          %v1451 = vpop.f32.mrb[0].mxu0
          %1452 = vmatprep.mubr.f32.mxu0 0.0
          %1453 = vmatmul.mubr.f32.gmra.mrb[0].mxu0 %v1317
          %v1454 = vpop.f32.mrb[0].mxu0
          %v1455 = vadd.f32 0.0, %v1454
          %v1456 = vpop.f32.mrb[0].mxu0
          %1457 = vmatprep.mubr.f32.mxu0 0.0
          %1458 = vmatmul.mubr.f32.gmra.mrb[0].mxu0 %v1320
          %v1459 = vpop.f32.mrb[0].mxu0
          %v1460 = vadd.f32 0.0, %v1459
          %v1461 = vpop.f32.mrb[0].mxu0
          %1462 = vmatprep.mubr.f32.mxu0 0.0
          %1463 = vmatmul.mubr.f32.gmra.mrb[0].mxu0 %v1323
          %v1464 = vpop.f32.mrb[0].mxu0
          %v1465 = vadd.f32 0.0, %v1464
          %v1466 = vpop.f32.mrb[0].mxu0
          %1467 = vmatprep.mubr.f32.mxu0 0.0
          %1468 = vmatmul.mubr.f32.gmra.mrb[0].mxu0 %v1326
          %v1469 = vpop.f32.mrb[0].mxu0
          %v1470 = vadd.f32 0.0, %v1469
          %v1471 = vpop.f32.mrb[0].mxu0
          %1472 = vdwg.mxu0
          %v1473 = vadd.f32 %v1176, %v1395
          %v1474 = vadd.f32 %v1181, %v1400
          %v1475 = vadd.f32 %v1186, %v1405
          %v1476 = vadd.f32 %v1191, %v1410
          %v1477 = vadd.f32 %v1196, %v1415
          %v1478 = vadd.f32 %v1201, %v1420
          %v1479 = vadd.f32 %v1206, %v1425
          %v1480 = vadd.f32 %v1211, %v1430
          %v1481 = vadd.f32 %v1216, %v1435
          %v1482 = vadd.f32 %v1221, %v1440
          %v1483 = vadd.f32 %v1226, %v1445
          %v1484 = vadd.f32 %v1231, %v1450
          %v1485 = vadd.f32 %v1236, %v1455
          %v1486 = vadd.f32 %v1241, %v1460
          %v1487 = vadd.f32 %v1246, %v1465
          %v1488 = vadd.f32 %v1251, %v1470
          %v1490 = vlaneseq
          %v1491 = vshrl.u32 %v1490, 7
          %v1492 = vsub.s32 0, %v1491
          %v1493 = vrot.slane %v810, %v1492
          %v1495 = vadd.f32 %v1473, %v1493
          %v1496 = vadd.f32 %v1474, %v1493
          %v1497 = vadd.f32 %v1475, %v1493
          %v1498 = vadd.f32 %v1476, %v1493
          %v1499 = vadd.f32 %v1477, %v1493
          %v1500 = vadd.f32 %v1478, %v1493
          %v1501 = vadd.f32 %v1479, %v1493
          %v1502 = vadd.f32 %v1480, %v1493
          %v1503 = vadd.f32 %v1481, %v1493
          %v1504 = vadd.f32 %v1482, %v1493
          %v1505 = vadd.f32 %v1483, %v1493
          %v1506 = vadd.f32 %v1484, %v1493
          %v1507 = vadd.f32 %v1485, %v1493
          %v1508 = vadd.f32 %v1486, %v1493
          %v1509 = vadd.f32 %v1487, %v1493
          %v1510 = vadd.f32 %v1488, %v1493
          %v1511 = vmax.f32 %v1495, 0.0
          %v1512 = vmax.f32 %v1496, 0.0
          %v1513 = vmax.f32 %v1497, 0.0
          %v1514 = vmax.f32 %v1498, 0.0
          %v1515 = vmax.f32 %v1499, 0.0
          %v1516 = vmax.f32 %v1500, 0.0
          %v1517 = vmax.f32 %v1501, 0.0
          %v1518 = vmax.f32 %v1502, 0.0
          %v1519 = vmax.f32 %v1503, 0.0
          %v1520 = vmax.f32 %v1504, 0.0
          %v1521 = vmax.f32 %v1505, 0.0
          %v1522 = vmax.f32 %v1506, 0.0
          %v1523 = vmax.f32 %v1507, 0.0
          %v1524 = vmax.f32 %v1508, 0.0
          %v1525 = vmax.f32 %v1509, 0.0
          %v1526 = vmax.f32 %v1510, 0.0
          %v1527 = vmax.f32 %v1511, %v1513
          %v1528 = vmax.f32 %v1512, %v1514
          %v1529 = vmax.f32 %v1515, %v1517
          %v1530 = vmax.f32 %v1516, %v1518
          %v1531 = vmax.f32 %v1519, %v1521
          %v1532 = vmax.f32 %v1520, %v1522
          %v1533 = vmax.f32 %v1523, %v1525
          %v1534 = vmax.f32 %v1524, %v1526
          %vm1535 = vcmask 261120
          %1536 = vst.msk [vmem:[#allocation5] sm:$0xff] %vm1535, %v1527
          %1537 = vst.msk [vmem:[#allocation5 + $0x8] sm:$0xff] %vm1535, %v1528
          %1538 = vst.msk [vmem:[#allocation5 + $0x10] sm:$0xff] %vm1535, %v1529
          %1539 = vst.msk [vmem:[#allocation5 + $0x18] sm:$0xff] %vm1535, %v1530
          %1540 = vst.msk [vmem:[#allocation5 + $0x20] sm:$0xff] %vm1535, %v1531
          %1541 = vst.msk [vmem:[#allocation5 + $0x28] sm:$0xff] %vm1535, %v1532
          %1542 = vst.msk [vmem:[#allocation5 + $0x30] sm:$0xff] %vm1535, %v1533
          %1543 = vst.msk [vmem:[#allocation5 + $0x38] sm:$0xff] %vm1535, %v1534
          %v1544 = vld [vmem:[#allocation5] ss:$2 sm:$0xff]
          %s1545 = scalar_lea.vmem [#allocation5], 16
          %v1546 = vld [vmem:[%s1545] ss:$2 sm:$0xff]
          %s1547 = scalar_lea.vmem [#allocation5], 32
          %v1548 = vld [vmem:[%s1547] ss:$2 sm:$0xff]
          %s1549 = scalar_lea.vmem [#allocation5], 48
          %v1550 = vld [vmem:[%s1549] ss:$2 sm:$0xff]
          %s1551 = scalar_lea.vmem [#allocation5], 1
          %v1552 = vld [vmem:[%s1551] ss:$2 sm:$0xff]
          %s1553 = scalar_lea.vmem [#allocation5], 17
          %v1554 = vld [vmem:[%s1553] ss:$2 sm:$0xff]
          %s1555 = scalar_lea.vmem [#allocation5], 33
          %v1556 = vld [vmem:[%s1555] ss:$2 sm:$0xff]
          %s1557 = scalar_lea.vmem [#allocation5], 49
          %v1558 = vld [vmem:[%s1557] ss:$2 sm:$0xff]
          %v1559 = vmax.f32 %v1544, %v1552
          %v1560 = vmax.f32 %v1546, %v1554
          %v1561 = vmax.f32 %v1548, %v1556
          %v1562 = vmax.f32 %v1550, %v1558
          %s1563 = scalar_lea.vmem [#allocation5], 2
          %v1564 = vld [vmem:[%s1563] ss:$2 sm:$0x7f]
          %s1565 = scalar_lea.vmem [#allocation5], 18
          %v1566 = vld [vmem:[%s1565] ss:$2 sm:$0x7f]
          %s1567 = scalar_lea.vmem [#allocation5], 34
          %v1568 = vld [vmem:[%s1567] ss:$2 sm:$0x7f]
          %s1569 = scalar_lea.vmem [#allocation5], 50
          %v1570 = vld [vmem:[%s1569] ss:$2 sm:$0x7f]
          %s1571 = scalar_lea.vmem [#allocation5], 3
          %v1572 = vld [vmem:[%s1571] ss:$2 sm:$0x7f]
          %s1573 = scalar_lea.vmem [#allocation5], 19
          %v1574 = vld [vmem:[%s1573] ss:$2 sm:$0x7f]
          %s1575 = scalar_lea.vmem [#allocation5], 35
          %v1576 = vld [vmem:[%s1575] ss:$2 sm:$0x7f]
          %s1577 = scalar_lea.vmem [#allocation5], 51
          %v1578 = vld [vmem:[%s1577] ss:$2 sm:$0x7f]
          %v1579 = vmax.f32 %v1564, %v1572
          %v1580 = vmax.f32 %v1566, %v1574
          %v1581 = vmax.f32 %v1568, %v1576
          %v1582 = vmax.f32 %v1570, %v1578
          %s1583 = smul.u32 %s812, 4
          %s1584 = sadd.s32 %s1583, 1
          %1589 = vrot.lane.b32.xlu0 %v1559, 32
          %v1590 = vpop.permute.xlu0 %1589
          %1591 = vrot.lane.b32.xlu0 %v1560, 32
          %v1592 = vpop.permute.xlu0 %1591
          %1593 = vrot.lane.b32.xlu0 %v1561, 32
          %v1594 = vpop.permute.xlu0 %1593
          %1595 = vrot.lane.b32.xlu0 %v1562, 32
          %v1596 = vpop.permute.xlu0 %1595
          %s1601 = smul.u32 %s1584, 8
          %s1602 = scalar_lea.vmem [#allocation3], %s1601
          %vm1603 = vcmask 523520
          %1604 = vst.msk [vmem:[%s1602] sm:$0xff] %vm1603, %v1590
          %1605 = vst.msk [vmem:[%s1602 + $0x8] sm:$0xff] %vm1603, %v1592
          %1606 = vst.msk [vmem:[%s1602 + $0x10] sm:$0xff] %vm1603, %v1594
          %1607 = vst.msk [vmem:[%s1602 + $0x18] sm:$0xff] %vm1603, %v1596
          %vm1608 = vcmask 260096
          %1609 = vst.msk [vmem:[%s1602 + $0x1] sm:$0x7f] %vm1608, %v1559
          %1610 = vst.msk [vmem:[%s1602 + $0x9] sm:$0x7f] %vm1608, %v1560
          %1611 = vst.msk [vmem:[%s1602 + $0x11] sm:$0x7f] %vm1608, %v1561
          %1612 = vst.msk [vmem:[%s1602 + $0x19] sm:$0x7f] %vm1608, %v1562
          %1617 = vrot.lane.b32.xlu0 %v1579, 64
          %v1618 = vpop.permute.xlu0 %1617
          %1619 = vrot.lane.b32.xlu0 %v1580, 64
          %v1620 = vpop.permute.xlu0 %1619
          %1621 = vrot.lane.b32.xlu0 %v1581, 64
          %v1622 = vpop.permute.xlu0 %1621
          %1623 = vrot.lane.b32.xlu0 %v1582, 64
          %v1624 = vpop.permute.xlu0 %1623
          %vm1629 = vcmask 784896
          %1630 = vst.msk [vmem:[%s1602] sm:$0x7f] %vm1629, %v1618
          %1631 = vst.msk [vmem:[%s1602 + $0x8] sm:$0x7f] %vm1629, %v1620
          %1632 = vst.msk [vmem:[%s1602 + $0x10] sm:$0x7f] %vm1629, %v1622
          %1633 = vst.msk [vmem:[%s1602 + $0x18] sm:$0x7f] %vm1629, %v1624
        $region76: #{tpu_custom_call.1} parent=63 // loop_footer
          %s816 = sadd.s32 1, %s812
        $region77: #{tpu_custom_call.1} parent=63 // loop_footer_branch
          %811 = sbr.rel target = $region73
        $region78: #{tpu_custom_call.1} parent=63 // loop_exit
          _
        %v1634 = vld [vmem:[#allocation3] sm:$0xff]
        %v1635 = vld [vmem:[#allocation3 + $0x8] sm:$0xff]
        %v1636 = vld [vmem:[#allocation3 + $0x10] sm:$0xff]
        %v1637 = vld [vmem:[#allocation3 + $0x18] sm:$0xff]
        %v1638 = vld [vmem:[#allocation3 + $0x20] sm:$0xff]
        %v1639 = vld [vmem:[#allocation3 + $0x28] sm:$0xff]
        %v1640 = vld [vmem:[#allocation3 + $0x30] sm:$0xff]
        %v1641 = vld [vmem:[#allocation3 + $0x38] sm:$0xff]
        %v1642 = vld [vmem:[%s5] sm:$0xff]
        %v1643 = vld [vmem:[%s5 + $0x8] sm:$0xff]
        %v1644 = vld [vmem:[%s5 + $0x10] sm:$0xff]
        %v1645 = vld [vmem:[%s5 + $0x18] sm:$0xff]
        %v1646 = vld [vmem:[%s5 + $0x20] sm:$0xff]
        %v1647 = vld [vmem:[%s5 + $0x28] sm:$0xff]
        %v1648 = vld [vmem:[%s5 + $0x30] sm:$0xff]
        %v1649 = vld [vmem:[%s5 + $0x38] sm:$0xff]
        %v1650 = vld [vmem:[%s5 + $0x40] sm:$0xff]
        %v1651 = vld [vmem:[%s5 + $0x48] sm:$0xff]
        %v1652 = vld [vmem:[%s5 + $0x50] sm:$0xff]
        %v1653 = vld [vmem:[%s5 + $0x58] sm:$0xff]
        %s1654 = scalar_lea.vmem [#allocation3], 8
        %v1655 = vld [vmem:[%s1654] sm:$0xff]
        %v1656 = vld [vmem:[%s1654 + $0x8] sm:$0xff]
        %v1657 = vld [vmem:[%s1654 + $0x10] sm:$0xff]
        %v1658 = vld [vmem:[%s1654 + $0x18] sm:$0xff]
        %v1659 = vld [vmem:[%s1654 + $0x20] sm:$0xff]
        %v1660 = vld [vmem:[%s1654 + $0x28] sm:$0xff]
        %v1661 = vld [vmem:[%s1654 + $0x30] sm:$0xff]
        %v1662 = vld [vmem:[%s1654 + $0x38] sm:$0xff]
        %s1663 = scalar_lea.vmem %s5, 96
        %v1664 = vld [vmem:[%s1663] sm:$0xff]
        %v1665 = vld [vmem:[%s1663 + $0x8] sm:$0xff]
        %v1666 = vld [vmem:[%s1663 + $0x10] sm:$0xff]
        %v1667 = vld [vmem:[%s1663 + $0x18] sm:$0xff]
        %v1668 = vld [vmem:[%s1663 + $0x20] sm:$0xff]
        %v1669 = vld [vmem:[%s1663 + $0x28] sm:$0xff]
        %v1670 = vld [vmem:[%s1663 + $0x30] sm:$0xff]
        %v1671 = vld [vmem:[%s1663 + $0x38] sm:$0xff]
        %v1672 = vld [vmem:[%s1663 + $0x40] sm:$0xff]
        %v1673 = vld [vmem:[%s1663 + $0x48] sm:$0xff]
        %v1674 = vld [vmem:[%s1663 + $0x50] sm:$0xff]
        %v1675 = vld [vmem:[%s1663 + $0x58] sm:$0xff]
        %v1677 = vsel %vm427, %v1655, 0
        %v1680 = vsel %vm427, %v1656, 0
        %v1683 = vsel %vm427, %v1657, 0
        %v1686 = vsel %vm427, %v1658, 0
        %v1689 = vsel %vm427, %v1659, 0
        %v1692 = vsel %vm427, %v1660, 0
        %v1695 = vsel %vm427, %v1661, 0
        %v1698 = vsel %vm427, %v1662, 0
        %1700 = vmatprep.subr.mxu0 0.0
        %1701 = vmatpush1.msra.mxu0 %v1664
        %1702 = vmatprep.subr.mxu0 0.0
        %1703 = vmatpush1.msra.mxu0 %v1665
        %1704 = vmatprep.subr.mxu0 0.0
        %1705 = vmatpush1.msra.mxu0 %v1666
        %1706 = vmatprep.subr.mxu0 0.0
        %1707 = vmatpush1.msra.mxu0 %v1667
        %1708 = vmatprep.subr.mxu0 0.0
        %1709 = vmatpush1.msra.mxu0 %v1668
        %1710 = vmatprep.subr.mxu0 0.0
        %1711 = vmatpush1.msra.mxu0 %v1669
        %1712 = vmatprep.subr.mxu0 0.0
        %1713 = vmatpush1.msra.mxu0 %v1670
        %1714 = vmatprep.subr.mxu0 0.0
        %1715 = vmatpush1.msra.mxu0 %v1671
        %1716 = vmatprep.subr.mxu0 0.0
        %1717 = vmatpush1.msra.mxu0 %v1672
        %1718 = vmatprep.subr.mxu0 0.0
        %1719 = vmatpush1.msra.mxu0 %v1673
        %1720 = vmatprep.subr.mxu0 0.0
        %1721 = vmatpush1.msra.mxu0 %v1674
        %1722 = vmatprep.subr.mxu0 0.0
        %1723 = vmatpush1.msra.mxu0 %v1675
        %1724 = vmatprep.subr.mxu0 0.0
        %1725 = vmatpush1.msra.mxu0 0.0
        %1726 = vmatprep.subr.mxu0 0.0
        %1727 = vmatpush1.msra.mxu0 0.0
        %1728 = vmatprep.subr.mxu0 0.0
        %1729 = vmatpush1.msra.mxu0 0.0
        %1730 = vmatprep.subr.mxu0 0.0
        %1731 = vmatpush1.msra.mxu0 0.0
        %1732 = vmatprep.subr.mxu0 0.0
        %1733 = vmatpush1.msra.mxu0 0.0
        %1734 = vmatprep.subr.mxu0 0.0
        %1735 = vmatpush1.msra.mxu0 0.0
        %1736 = vmatprep.subr.mxu0 0.0
        %1737 = vmatpush1.msra.mxu0 0.0
        %1738 = vmatprep.subr.mxu0 0.0
        %1739 = vmatpush1.msra.mxu0 0.0
        %1740 = vmatprep.subr.mxu0 0.0
        %1741 = vmatpush1.msra.mxu0 0.0
        %1742 = vmatprep.subr.mxu0 0.0
        %1743 = vmatpush1.msra.mxu0 0.0
        %1744 = vmatprep.subr.mxu0 0.0
        %1745 = vmatpush1.msra.mxu0 0.0
        %1746 = vmatprep.subr.mxu0 0.0
        %1747 = vmatpush1.msra.mxu0 0.0
        %1748 = vmatprep.subr.mxu0 0.0
        %1749 = vmatpush1.msra.mxu0 0.0
        %1750 = vmatprep.subr.mxu0 0.0
        %1751 = vmatpush1.msra.mxu0 0.0
        %1752 = vmatprep.subr.mxu0 0.0
        %1753 = vmatpush1.msra.mxu0 0.0
        %1754 = vmatprep.subr.mxu0 0.0
        %1755 = vmatpush1.msra.mxu0 0.0
        %1756 = vmatprep.subr.mxu0 0.0
        %1757 = vmatpush1.msra.mxu0 0.0
        %1758 = vmatprep.subr.mxu0 0.0
        %1759 = vmatpush1.msra.mxu0 0.0
        %1760 = vmatprep.subr.mxu0 0.0
        %1761 = vmatpush1.msra.mxu0 0.0
        %1762 = vmatprep.subr.mxu0 0.0
        %1763 = vmatpush1.msra.mxu0 0.0
        %1764 = vmatprep.mubr.f32.mxu0 0.0
        %1765 = vmatmul.mubr.f32.gmra.mrb[0].mxu0 %v1677
        %v1766 = vpop.f32.mrb[0].mxu0
        %v1767 = vadd.f32 0.0, %v1766
        %v1768 = vpop.f32.mrb[0].mxu0
        %1769 = vmatprep.mubr.f32.mxu0 0.0
        %1770 = vmatmul.mubr.f32.gmra.mrb[0].mxu0 %v1680
        %v1771 = vpop.f32.mrb[0].mxu0
        %v1772 = vadd.f32 0.0, %v1771
        %v1773 = vpop.f32.mrb[0].mxu0
        %1774 = vmatprep.mubr.f32.mxu0 0.0
        %1775 = vmatmul.mubr.f32.gmra.mrb[0].mxu0 %v1683
        %v1776 = vpop.f32.mrb[0].mxu0
        %v1777 = vadd.f32 0.0, %v1776
        %v1778 = vpop.f32.mrb[0].mxu0
        %1779 = vmatprep.mubr.f32.mxu0 0.0
        %1780 = vmatmul.mubr.f32.gmra.mrb[0].mxu0 %v1686
        %v1781 = vpop.f32.mrb[0].mxu0
        %v1782 = vadd.f32 0.0, %v1781
        %v1783 = vpop.f32.mrb[0].mxu0
        %1784 = vmatprep.mubr.f32.mxu0 0.0
        %1785 = vmatmul.mubr.f32.gmra.mrb[0].mxu0 %v1689
        %v1786 = vpop.f32.mrb[0].mxu0
        %v1787 = vadd.f32 0.0, %v1786
        %v1788 = vpop.f32.mrb[0].mxu0
        %1789 = vmatprep.mubr.f32.mxu0 0.0
        %1790 = vmatmul.mubr.f32.gmra.mrb[0].mxu0 %v1692
        %v1791 = vpop.f32.mrb[0].mxu0
        %v1792 = vadd.f32 0.0, %v1791
        %v1793 = vpop.f32.mrb[0].mxu0
        %1794 = vmatprep.mubr.f32.mxu0 0.0
        %1795 = vmatmul.mubr.f32.gmra.mrb[0].mxu0 %v1695
        %v1796 = vpop.f32.mrb[0].mxu0
        %v1797 = vadd.f32 0.0, %v1796
        %v1798 = vpop.f32.mrb[0].mxu0
        %1799 = vmatprep.mubr.f32.mxu0 0.0
        %1800 = vmatmul.mubr.f32.gmra.mrb[0].mxu0 %v1698
        %v1801 = vpop.f32.mrb[0].mxu0
        %v1802 = vadd.f32 0.0, %v1801
        %v1803 = vpop.f32.mrb[0].mxu0
        %1804 = vdwg.mxu0
        %v1806 = vsel %vm427, %v1634, 0
        %v1809 = vsel %vm427, %v1635, 0
        %v1812 = vsel %vm427, %v1636, 0
        %v1815 = vsel %vm427, %v1637, 0
        %v1818 = vsel %vm427, %v1638, 0
        %v1821 = vsel %vm427, %v1639, 0
        %v1824 = vsel %vm427, %v1640, 0
        %v1827 = vsel %vm427, %v1641, 0
        %1829 = vmatprep.subr.mxu0 0.0
        %1830 = vmatpush1.msra.mxu0 %v1642
        %1831 = vmatprep.subr.mxu0 0.0
        %1832 = vmatpush1.msra.mxu0 %v1643
        %1833 = vmatprep.subr.mxu0 0.0
        %1834 = vmatpush1.msra.mxu0 %v1644
        %1835 = vmatprep.subr.mxu0 0.0
        %1836 = vmatpush1.msra.mxu0 %v1645
        %1837 = vmatprep.subr.mxu0 0.0
        %1838 = vmatpush1.msra.mxu0 %v1646
        %1839 = vmatprep.subr.mxu0 0.0
        %1840 = vmatpush1.msra.mxu0 %v1647
        %1841 = vmatprep.subr.mxu0 0.0
        %1842 = vmatpush1.msra.mxu0 %v1648
        %1843 = vmatprep.subr.mxu0 0.0
        %1844 = vmatpush1.msra.mxu0 %v1649
        %1845 = vmatprep.subr.mxu0 0.0
        %1846 = vmatpush1.msra.mxu0 %v1650
        %1847 = vmatprep.subr.mxu0 0.0
        %1848 = vmatpush1.msra.mxu0 %v1651
        %1849 = vmatprep.subr.mxu0 0.0
        %1850 = vmatpush1.msra.mxu0 %v1652
        %1851 = vmatprep.subr.mxu0 0.0
        %1852 = vmatpush1.msra.mxu0 %v1653
        %1853 = vmatprep.subr.mxu0 0.0
        %1854 = vmatpush1.msra.mxu0 0.0
        %1855 = vmatprep.subr.mxu0 0.0
        %1856 = vmatpush1.msra.mxu0 0.0
        %1857 = vmatprep.subr.mxu0 0.0
        %1858 = vmatpush1.msra.mxu0 0.0
        %1859 = vmatprep.subr.mxu0 0.0
        %1860 = vmatpush1.msra.mxu0 0.0
        %1861 = vmatprep.subr.mxu0 0.0
        %1862 = vmatpush1.msra.mxu0 0.0
        %1863 = vmatprep.subr.mxu0 0.0
        %1864 = vmatpush1.msra.mxu0 0.0
        %1865 = vmatprep.subr.mxu0 0.0
        %1866 = vmatpush1.msra.mxu0 0.0
        %1867 = vmatprep.subr.mxu0 0.0
        %1868 = vmatpush1.msra.mxu0 0.0
        %1869 = vmatprep.subr.mxu0 0.0
        %1870 = vmatpush1.msra.mxu0 0.0
        %1871 = vmatprep.subr.mxu0 0.0
        %1872 = vmatpush1.msra.mxu0 0.0
        %1873 = vmatprep.subr.mxu0 0.0
        %1874 = vmatpush1.msra.mxu0 0.0
        %1875 = vmatprep.subr.mxu0 0.0
        %1876 = vmatpush1.msra.mxu0 0.0
        %1877 = vmatprep.subr.mxu0 0.0
        %1878 = vmatpush1.msra.mxu0 0.0
        %1879 = vmatprep.subr.mxu0 0.0
        %1880 = vmatpush1.msra.mxu0 0.0
        %1881 = vmatprep.subr.mxu0 0.0
        %1882 = vmatpush1.msra.mxu0 0.0
        %1883 = vmatprep.subr.mxu0 0.0
        %1884 = vmatpush1.msra.mxu0 0.0
        %1885 = vmatprep.subr.mxu0 0.0
        %1886 = vmatpush1.msra.mxu0 0.0
        %1887 = vmatprep.subr.mxu0 0.0
        %1888 = vmatpush1.msra.mxu0 0.0
        %1889 = vmatprep.subr.mxu0 0.0
        %1890 = vmatpush1.msra.mxu0 0.0
        %1891 = vmatprep.subr.mxu0 0.0
        %1892 = vmatpush1.msra.mxu0 0.0
        %1893 = vmatprep.mubr.f32.mxu0 0.0
        %1894 = vmatmul.mubr.f32.gmra.mrb[0].mxu0 %v1806
        %v1895 = vpop.f32.mrb[0].mxu0
        %v1896 = vadd.f32 %v1767, %v1895
        %v1897 = vpop.f32.mrb[0].mxu0
        %1898 = vmatprep.mubr.f32.mxu0 0.0
        %1899 = vmatmul.mubr.f32.gmra.mrb[0].mxu0 %v1809
        %v1900 = vpop.f32.mrb[0].mxu0
        %v1901 = vadd.f32 %v1772, %v1900
        %v1902 = vpop.f32.mrb[0].mxu0
        %1903 = vmatprep.mubr.f32.mxu0 0.0
        %1904 = vmatmul.mubr.f32.gmra.mrb[0].mxu0 %v1812
        %v1905 = vpop.f32.mrb[0].mxu0
        %v1906 = vadd.f32 %v1777, %v1905
        %v1907 = vpop.f32.mrb[0].mxu0
        %1908 = vmatprep.mubr.f32.mxu0 0.0
        %1909 = vmatmul.mubr.f32.gmra.mrb[0].mxu0 %v1815
        %v1910 = vpop.f32.mrb[0].mxu0
        %v1911 = vadd.f32 %v1782, %v1910
        %v1912 = vpop.f32.mrb[0].mxu0
        %1913 = vmatprep.mubr.f32.mxu0 0.0
        %1914 = vmatmul.mubr.f32.gmra.mrb[0].mxu0 %v1818
        %v1915 = vpop.f32.mrb[0].mxu0
        %v1916 = vadd.f32 %v1787, %v1915
        %v1917 = vpop.f32.mrb[0].mxu0
        %1918 = vmatprep.mubr.f32.mxu0 0.0
        %1919 = vmatmul.mubr.f32.gmra.mrb[0].mxu0 %v1821
        %v1920 = vpop.f32.mrb[0].mxu0
        %v1921 = vadd.f32 %v1792, %v1920
        %v1922 = vpop.f32.mrb[0].mxu0
        %1923 = vmatprep.mubr.f32.mxu0 0.0
        %1924 = vmatmul.mubr.f32.gmra.mrb[0].mxu0 %v1824
        %v1925 = vpop.f32.mrb[0].mxu0
        %v1926 = vadd.f32 %v1797, %v1925
        %v1927 = vpop.f32.mrb[0].mxu0
        %1928 = vmatprep.mubr.f32.mxu0 0.0
        %1929 = vmatmul.mubr.f32.gmra.mrb[0].mxu0 %v1827
        %v1930 = vpop.f32.mrb[0].mxu0
        %v1931 = vadd.f32 %v1802, %v1930
        %v1932 = vpop.f32.mrb[0].mxu0
        %1933 = vdwg.mxu0
        %s1934 = scalar_lea.vmem [#allocation3], 16
        %v1935 = vld [vmem:[%s1934] sm:$0xff]
        %v1936 = vld [vmem:[%s1934 + $0x8] sm:$0xff]
        %v1937 = vld [vmem:[%s1934 + $0x10] sm:$0xff]
        %v1938 = vld [vmem:[%s1934 + $0x18] sm:$0xff]
        %v1939 = vld [vmem:[%s1934 + $0x20] sm:$0xff]
        %v1940 = vld [vmem:[%s1934 + $0x28] sm:$0xff]
        %v1941 = vld [vmem:[%s1934 + $0x30] sm:$0xff]
        %v1942 = vld [vmem:[%s1934 + $0x38] sm:$0xff]
        %s1943 = scalar_lea.vmem %s5, 192
        %v1944 = vld [vmem:[%s1943] sm:$0xff]
        %v1945 = vld [vmem:[%s1943 + $0x8] sm:$0xff]
        %v1946 = vld [vmem:[%s1943 + $0x10] sm:$0xff]
        %v1947 = vld [vmem:[%s1943 + $0x18] sm:$0xff]
        %v1948 = vld [vmem:[%s1943 + $0x20] sm:$0xff]
        %v1949 = vld [vmem:[%s1943 + $0x28] sm:$0xff]
        %v1950 = vld [vmem:[%s1943 + $0x30] sm:$0xff]
        %v1951 = vld [vmem:[%s1943 + $0x38] sm:$0xff]
        %v1952 = vld [vmem:[%s1943 + $0x40] sm:$0xff]
        %v1953 = vld [vmem:[%s1943 + $0x48] sm:$0xff]
        %v1954 = vld [vmem:[%s1943 + $0x50] sm:$0xff]
        %v1955 = vld [vmem:[%s1943 + $0x58] sm:$0xff]
        %v1957 = vsel %vm427, %v1935, 0
        %v1960 = vsel %vm427, %v1936, 0
        %v1963 = vsel %vm427, %v1937, 0
        %v1966 = vsel %vm427, %v1938, 0
        %v1969 = vsel %vm427, %v1939, 0
        %v1972 = vsel %vm427, %v1940, 0
        %v1975 = vsel %vm427, %v1941, 0
        %v1978 = vsel %vm427, %v1942, 0
        %1980 = vmatprep.subr.mxu0 0.0
        %1981 = vmatpush1.msra.mxu0 %v1944
        %1982 = vmatprep.subr.mxu0 0.0
        %1983 = vmatpush1.msra.mxu0 %v1945
        %1984 = vmatprep.subr.mxu0 0.0
        %1985 = vmatpush1.msra.mxu0 %v1946
        %1986 = vmatprep.subr.mxu0 0.0
        %1987 = vmatpush1.msra.mxu0 %v1947
        %1988 = vmatprep.subr.mxu0 0.0
        %1989 = vmatpush1.msra.mxu0 %v1948
        %1990 = vmatprep.subr.mxu0 0.0
        %1991 = vmatpush1.msra.mxu0 %v1949
        %1992 = vmatprep.subr.mxu0 0.0
        %1993 = vmatpush1.msra.mxu0 %v1950
        %1994 = vmatprep.subr.mxu0 0.0
        %1995 = vmatpush1.msra.mxu0 %v1951
        %1996 = vmatprep.subr.mxu0 0.0
        %1997 = vmatpush1.msra.mxu0 %v1952
        %1998 = vmatprep.subr.mxu0 0.0
        %1999 = vmatpush1.msra.mxu0 %v1953
        %2000 = vmatprep.subr.mxu0 0.0
        %2001 = vmatpush1.msra.mxu0 %v1954
        %2002 = vmatprep.subr.mxu0 0.0
        %2003 = vmatpush1.msra.mxu0 %v1955
        %2004 = vmatprep.subr.mxu0 0.0
        %2005 = vmatpush1.msra.mxu0 0.0
        %2006 = vmatprep.subr.mxu0 0.0
        %2007 = vmatpush1.msra.mxu0 0.0
        %2008 = vmatprep.subr.mxu0 0.0
        %2009 = vmatpush1.msra.mxu0 0.0
        %2010 = vmatprep.subr.mxu0 0.0
        %2011 = vmatpush1.msra.mxu0 0.0
        %2012 = vmatprep.subr.mxu0 0.0
        %2013 = vmatpush1.msra.mxu0 0.0
        %2014 = vmatprep.subr.mxu0 0.0
        %2015 = vmatpush1.msra.mxu0 0.0
        %2016 = vmatprep.subr.mxu0 0.0
        %2017 = vmatpush1.msra.mxu0 0.0
        %2018 = vmatprep.subr.mxu0 0.0
        %2019 = vmatpush1.msra.mxu0 0.0
        %2020 = vmatprep.subr.mxu0 0.0
        %2021 = vmatpush1.msra.mxu0 0.0
        %2022 = vmatprep.subr.mxu0 0.0
        %2023 = vmatpush1.msra.mxu0 0.0
        %2024 = vmatprep.subr.mxu0 0.0
        %2025 = vmatpush1.msra.mxu0 0.0
        %2026 = vmatprep.subr.mxu0 0.0
        %2027 = vmatpush1.msra.mxu0 0.0
        %2028 = vmatprep.subr.mxu0 0.0
        %2029 = vmatpush1.msra.mxu0 0.0
        %2030 = vmatprep.subr.mxu0 0.0
        %2031 = vmatpush1.msra.mxu0 0.0
        %2032 = vmatprep.subr.mxu0 0.0
        %2033 = vmatpush1.msra.mxu0 0.0
        %2034 = vmatprep.subr.mxu0 0.0
        %2035 = vmatpush1.msra.mxu0 0.0
        %2036 = vmatprep.subr.mxu0 0.0
        %2037 = vmatpush1.msra.mxu0 0.0
        %2038 = vmatprep.subr.mxu0 0.0
        %2039 = vmatpush1.msra.mxu0 0.0
        %2040 = vmatprep.subr.mxu0 0.0
        %2041 = vmatpush1.msra.mxu0 0.0
        %2042 = vmatprep.subr.mxu0 0.0
        %2043 = vmatpush1.msra.mxu0 0.0
        %2044 = vmatprep.mubr.f32.mxu0 0.0
        %2045 = vmatmul.mubr.f32.gmra.mrb[0].mxu0 %v1957
        %v2046 = vpop.f32.mrb[0].mxu0
        %v2047 = vadd.f32 0.0, %v2046
        %v2048 = vpop.f32.mrb[0].mxu0
        %2049 = vmatprep.mubr.f32.mxu0 0.0
        %2050 = vmatmul.mubr.f32.gmra.mrb[0].mxu0 %v1960
        %v2051 = vpop.f32.mrb[0].mxu0
        %v2052 = vadd.f32 0.0, %v2051
        %v2053 = vpop.f32.mrb[0].mxu0
        %2054 = vmatprep.mubr.f32.mxu0 0.0
        %2055 = vmatmul.mubr.f32.gmra.mrb[0].mxu0 %v1963
        %v2056 = vpop.f32.mrb[0].mxu0
        %v2057 = vadd.f32 0.0, %v2056
        %v2058 = vpop.f32.mrb[0].mxu0
        %2059 = vmatprep.mubr.f32.mxu0 0.0
        %2060 = vmatmul.mubr.f32.gmra.mrb[0].mxu0 %v1966
        %v2061 = vpop.f32.mrb[0].mxu0
        %v2062 = vadd.f32 0.0, %v2061
        %v2063 = vpop.f32.mrb[0].mxu0
        %2064 = vmatprep.mubr.f32.mxu0 0.0
        %2065 = vmatmul.mubr.f32.gmra.mrb[0].mxu0 %v1969
        %v2066 = vpop.f32.mrb[0].mxu0
        %v2067 = vadd.f32 0.0, %v2066
        %v2068 = vpop.f32.mrb[0].mxu0
        %2069 = vmatprep.mubr.f32.mxu0 0.0
        %2070 = vmatmul.mubr.f32.gmra.mrb[0].mxu0 %v1972
        %v2071 = vpop.f32.mrb[0].mxu0
        %v2072 = vadd.f32 0.0, %v2071
        %v2073 = vpop.f32.mrb[0].mxu0
        %2074 = vmatprep.mubr.f32.mxu0 0.0
        %2075 = vmatmul.mubr.f32.gmra.mrb[0].mxu0 %v1975
        %v2076 = vpop.f32.mrb[0].mxu0
        %v2077 = vadd.f32 0.0, %v2076
        %v2078 = vpop.f32.mrb[0].mxu0
        %2079 = vmatprep.mubr.f32.mxu0 0.0
        %2080 = vmatmul.mubr.f32.gmra.mrb[0].mxu0 %v1978
        %v2081 = vpop.f32.mrb[0].mxu0
        %v2082 = vadd.f32 0.0, %v2081
        %v2083 = vpop.f32.mrb[0].mxu0
        %2084 = vdwg.mxu0
        %v2085 = vadd.f32 %v1896, %v2047
        %v2086 = vadd.f32 %v1901, %v2052
        %v2087 = vadd.f32 %v1906, %v2057
        %v2088 = vadd.f32 %v1911, %v2062
        %v2089 = vadd.f32 %v1916, %v2067
        %v2090 = vadd.f32 %v1921, %v2072
        %v2091 = vadd.f32 %v1926, %v2077
        %v2092 = vadd.f32 %v1931, %v2082
        %v2093 = vld [vmem:[%s6] sm:$0x1]
        %v2095 = vlaneseq
        %v2096 = vshrl.u32 %v2095, 7
        %v2097 = vsub.s32 0, %v2096
        %v2098 = vrot.slane %v2093, %v2097
        %v2100 = vadd.f32 %v2085, %v2098
        %v2101 = vadd.f32 %v2086, %v2098
        %v2102 = vadd.f32 %v2087, %v2098
        %v2103 = vadd.f32 %v2088, %v2098
        %v2104 = vadd.f32 %v2089, %v2098
        %v2105 = vadd.f32 %v2090, %v2098
        %v2106 = vadd.f32 %v2091, %v2098
        %v2107 = vadd.f32 %v2092, %v2098
        %v2108 = vmax.f32 %v2100, 0.0
        %v2109 = vmax.f32 %v2101, 0.0
        %v2110 = vmax.f32 %v2102, 0.0
        %v2111 = vmax.f32 %v2103, 0.0
        %v2112 = vmax.f32 %v2104, 0.0
        %v2113 = vmax.f32 %v2105, 0.0
        %v2114 = vmax.f32 %v2106, 0.0
        %v2115 = vmax.f32 %v2107, 0.0
        %vm2116 = vcmask 523264
        %v2117 = vsel %vm2116, %v2108, 0.0
        %v2118 = vsel %vm2116, %v2109, 0.0
        %v2119 = vadd.f32 %v2117, %v2118
        %v2120 = vsel %vm2116, %v2110, 0.0
        %v2121 = vadd.f32 %v2119, %v2120
        %v2122 = vsel %vm2116, %v2111, 0.0
        %v2123 = vadd.f32 %v2121, %v2122
        %v2124 = vsel %vm2116, %v2112, 0.0
        %v2125 = vadd.f32 %v2123, %v2124
        %v2126 = vsel %vm2116, %v2113, 0.0
        %v2127 = vadd.f32 %v2125, %v2126
        %v2128 = vsel %vm2116, %v2114, 0.0
        %v2129 = vadd.f32 %v2127, %v2128
        %v2130 = vsel %vm2116, %v2115, 0.0
        %v2131 = vadd.f32 %v2129, %v2130
        %v2132 = vrot.slane %v2131, 4
        %v2133 = vadd.f32 %v2131, %v2132
        %v2134 = vrot.slane %v2133, 2
        %v2135 = vadd.f32 %v2133, %v2134
        %v2136 = vrot.slane %v2135, 1
        %v2137 = vadd.f32 %v2135, %v2136
        %v2138 = vrcp.pop 64.0
        %v2139 = vmul.f32 %v2137, %v2138
        %v2140 = vld [vmem:[%s7] sm:$0xff]
        %v2141 = vld [vmem:[%s7 + $0x8] sm:$0xff]
        %v2142 = vld [vmem:[%s7 + $0x10] sm:$0xff]
        %v2143 = vld [vmem:[%s7 + $0x18] sm:$0xff]
        %v2144 = vld [vmem:[%s7 + $0x20] sm:$0xff]
        %v2145 = vld [vmem:[%s7 + $0x28] sm:$0xff]
        %v2146 = vld [vmem:[%s7 + $0x30] sm:$0xff]
        %v2147 = vld [vmem:[%s7 + $0x38] sm:$0xff]
        %v2148 = vld [vmem:[%s8] sm:$0x1]
        %v2150 = vsel %vm2116, %v2139, 0
        %2152 = vmatprep.subr.mxu0 0.0
        %2153 = vmatpush1.msra.mxu0 %v2140
        %2154 = vmatprep.subr.mxu0 0.0
        %2155 = vmatpush1.msra.mxu0 %v2141
        %2156 = vmatprep.subr.mxu0 0.0
        %2157 = vmatpush1.msra.mxu0 %v2142
        %2158 = vmatprep.subr.mxu0 0.0
        %2159 = vmatpush1.msra.mxu0 %v2143
        %2160 = vmatprep.subr.mxu0 0.0
        %2161 = vmatpush1.msra.mxu0 %v2144
        %2162 = vmatprep.subr.mxu0 0.0
        %2163 = vmatpush1.msra.mxu0 %v2145
        %2164 = vmatprep.subr.mxu0 0.0
        %2165 = vmatpush1.msra.mxu0 %v2146
        %2166 = vmatprep.subr.mxu0 0.0
        %2167 = vmatpush1.msra.mxu0 %v2147
        %2168 = vmatprep.subr.mxu0 0.0
        %2169 = vmatpush1.msra.mxu0 0.0
        %2170 = vmatprep.subr.mxu0 0.0
        %2171 = vmatpush1.msra.mxu0 0.0
        %2172 = vmatprep.subr.mxu0 0.0
        %2173 = vmatpush1.msra.mxu0 0.0
        %2174 = vmatprep.subr.mxu0 0.0
        %2175 = vmatpush1.msra.mxu0 0.0
        %2176 = vmatprep.subr.mxu0 0.0
        %2177 = vmatpush1.msra.mxu0 0.0
        %2178 = vmatprep.subr.mxu0 0.0
        %2179 = vmatpush1.msra.mxu0 0.0
        %2180 = vmatprep.subr.mxu0 0.0
        %2181 = vmatpush1.msra.mxu0 0.0
        %2182 = vmatprep.subr.mxu0 0.0
        %2183 = vmatpush1.msra.mxu0 0.0
        %2184 = vmatprep.subr.mxu0 0.0
        %2185 = vmatpush1.msra.mxu0 0.0
        %2186 = vmatprep.subr.mxu0 0.0
        %2187 = vmatpush1.msra.mxu0 0.0
        %2188 = vmatprep.subr.mxu0 0.0
        %2189 = vmatpush1.msra.mxu0 0.0
        %2190 = vmatprep.subr.mxu0 0.0
        %2191 = vmatpush1.msra.mxu0 0.0
        %2192 = vmatprep.subr.mxu0 0.0
        %2193 = vmatpush1.msra.mxu0 0.0
        %2194 = vmatprep.subr.mxu0 0.0
        %2195 = vmatpush1.msra.mxu0 0.0
        %2196 = vmatprep.subr.mxu0 0.0
        %2197 = vmatpush1.msra.mxu0 0.0
        %2198 = vmatprep.subr.mxu0 0.0
        %2199 = vmatpush1.msra.mxu0 0.0
        %2200 = vmatprep.subr.mxu0 0.0
        %2201 = vmatpush1.msra.mxu0 0.0
        %2202 = vmatprep.subr.mxu0 0.0
        %2203 = vmatpush1.msra.mxu0 0.0
        %2204 = vmatprep.subr.mxu0 0.0
        %2205 = vmatpush1.msra.mxu0 0.0
        %2206 = vmatprep.subr.mxu0 0.0
        %2207 = vmatpush1.msra.mxu0 0.0
        %2208 = vmatprep.subr.mxu0 0.0
        %2209 = vmatpush1.msra.mxu0 0.0
        %2210 = vmatprep.subr.mxu0 0.0
        %2211 = vmatpush1.msra.mxu0 0.0
        %2212 = vmatprep.subr.mxu0 0.0
        %2213 = vmatpush1.msra.mxu0 0.0
        %2214 = vmatprep.subr.mxu0 0.0
        %2215 = vmatpush1.msra.mxu0 0.0
        %2216 = vmatprep.mubr.f32.mxu0 0.0
        %2217 = vmatmul.mubr.f32.gmra.mrb[0].mxu0 %v2150
        %v2218 = vpop.f32.mrb[0].mxu0
        %v2219 = vadd.f32 %v2148, %v2218
        %v2220 = vpop.f32.mrb[0].mxu0
        %2221 = vdwg.mxu0
        %v2222 = vmax.f32 %v2219, 0.0
        %v2223 = vld [vmem:[%s9] sm:$0xff]
        %v2224 = vld [vmem:[%s9 + $0x8] sm:$0xff]
        %v2225 = vld [vmem:[%s9 + $0x10] sm:$0xff]
        %v2226 = vld [vmem:[%s9 + $0x18] sm:$0xff]
        %v2227 = vld [vmem:[%s9 + $0x20] sm:$0xff]
        %v2228 = vld [vmem:[%s9 + $0x28] sm:$0xff]
        %v2229 = vld [vmem:[%s9 + $0x30] sm:$0xff]
        %v2230 = vld [vmem:[%s9 + $0x38] sm:$0xff]
        %v2231 = vld [vmem:[%s10] sm:$0x1]
        %v2233 = vsel %vm2116, %v2222, 0
        %2235 = vmatprep.subr.mxu0 0.0
        %2236 = vmatpush1.msra.mxu0 %v2223
        %2237 = vmatprep.subr.mxu0 0.0
        %2238 = vmatpush1.msra.mxu0 %v2224
        %2239 = vmatprep.subr.mxu0 0.0
        %2240 = vmatpush1.msra.mxu0 %v2225
        %2241 = vmatprep.subr.mxu0 0.0
        %2242 = vmatpush1.msra.mxu0 %v2226
        %2243 = vmatprep.subr.mxu0 0.0
        %2244 = vmatpush1.msra.mxu0 %v2227
        %2245 = vmatprep.subr.mxu0 0.0
        %2246 = vmatpush1.msra.mxu0 %v2228
        %2247 = vmatprep.subr.mxu0 0.0
        %2248 = vmatpush1.msra.mxu0 %v2229
        %2249 = vmatprep.subr.mxu0 0.0
        %2250 = vmatpush1.msra.mxu0 %v2230
        %2251 = vmatprep.subr.mxu0 0.0
        %2252 = vmatpush1.msra.mxu0 0.0
        %2253 = vmatprep.subr.mxu0 0.0
        %2254 = vmatpush1.msra.mxu0 0.0
        %2255 = vmatprep.subr.mxu0 0.0
        %2256 = vmatpush1.msra.mxu0 0.0
        %2257 = vmatprep.subr.mxu0 0.0
        %2258 = vmatpush1.msra.mxu0 0.0
        %2259 = vmatprep.subr.mxu0 0.0
        %2260 = vmatpush1.msra.mxu0 0.0
        %2261 = vmatprep.subr.mxu0 0.0
        %2262 = vmatpush1.msra.mxu0 0.0
        %2263 = vmatprep.subr.mxu0 0.0
        %2264 = vmatpush1.msra.mxu0 0.0
        %2265 = vmatprep.subr.mxu0 0.0
        %2266 = vmatpush1.msra.mxu0 0.0
        %2267 = vmatprep.subr.mxu0 0.0
        %2268 = vmatpush1.msra.mxu0 0.0
        %2269 = vmatprep.subr.mxu0 0.0
        %2270 = vmatpush1.msra.mxu0 0.0
        %2271 = vmatprep.subr.mxu0 0.0
        %2272 = vmatpush1.msra.mxu0 0.0
        %2273 = vmatprep.subr.mxu0 0.0
        %2274 = vmatpush1.msra.mxu0 0.0
        %2275 = vmatprep.subr.mxu0 0.0
        %2276 = vmatpush1.msra.mxu0 0.0
        %2277 = vmatprep.subr.mxu0 0.0
        %2278 = vmatpush1.msra.mxu0 0.0
        %2279 = vmatprep.subr.mxu0 0.0
        %2280 = vmatpush1.msra.mxu0 0.0
        %2281 = vmatprep.subr.mxu0 0.0
        %2282 = vmatpush1.msra.mxu0 0.0
        %2283 = vmatprep.subr.mxu0 0.0
        %2284 = vmatpush1.msra.mxu0 0.0
        %2285 = vmatprep.subr.mxu0 0.0
        %2286 = vmatpush1.msra.mxu0 0.0
        %2287 = vmatprep.subr.mxu0 0.0
        %2288 = vmatpush1.msra.mxu0 0.0
        %2289 = vmatprep.subr.mxu0 0.0
        %2290 = vmatpush1.msra.mxu0 0.0
        %2291 = vmatprep.subr.mxu0 0.0
        %2292 = vmatpush1.msra.mxu0 0.0
        %2293 = vmatprep.subr.mxu0 0.0
        %2294 = vmatpush1.msra.mxu0 0.0
        %2295 = vmatprep.subr.mxu0 0.0
        %2296 = vmatpush1.msra.mxu0 0.0
        %2297 = vmatprep.subr.mxu0 0.0
        %2298 = vmatpush1.msra.mxu0 0.0
        %2299 = vmatprep.mubr.f32.mxu0 0.0
        %2300 = vmatmul.mubr.f32.gmra.mrb[0].mxu0 %v2233
        %v2301 = vpop.f32.mrb[0].mxu0
        %v2302 = vadd.f32 %v2231, %v2301
        %v2303 = vpop.f32.mrb[0].mxu0
        %2304 = vdwg.mxu0
        %2305 = vst [vmem:[%s378] sm:$0x1] %v2302
        %s2306 = sand.u32 %s269, 1
        %s2307 = scalar_lea.sflag [#allocation7], %s2306
        %s2308 = sand.u32 %s269, 1
        %s2309 = scalar_lea.vmem [#allocation6], %s2308
        // Predicated region
        $region79: #{tpu_custom_call.1} parent=63 // pred_check
          %p2310 = pneg %p279
        $region80: #{tpu_custom_call.1} parent=63 // pred_check_branch
          %2312 = sbr.rel (%p2310) target = $region82
        $region81: #{tpu_custom_call.1} parent=63 // pred_region
          %s2314 = ssub.s32 16, 16
          %2315 = vsyncadd %s2307, %s2314
          %s2316 = smul.addr %s25, 16
          %s2317 = scalar_lea.hbm %s11, %s2316
          %s2319 = sshll.u32 %s2309, 4
          %s2320 = int_to_ptr.vmem [resolvable:$true] %s2319
          %2322 = dma.vmem_to_hbm [thread:$0]  %s2320, 16, %s2317, %s2307
        $region82: #{tpu_custom_call.1} parent=63 // pred_fallthru
          _
      $region64: #{tpu_custom_call.1} parent=5 // pred_fallthru
        _
      %p2323 = scmp.le.s32.totalorder 2, %s20
      // Predicated region
      $region83: #{tpu_custom_call.1} parent=5 // pred_check
        %p2324 = pneg %p2323
      $region84: #{tpu_custom_call.1} parent=5 // pred_check_branch
        %2326 = sbr.rel (%p2324) target = $region86
      $region85: #{tpu_custom_call.1} parent=5 // pred_region
        %s2327 = ssub.s32 %s20, 2
        // Predicated region
        $region87: #{tpu_custom_call.1} parent=85 // pred_check
          %p2328 = pneg %p285
        $region88: #{tpu_custom_call.1} parent=85 // pred_check_branch
          %2330 = sbr.rel (%p2328) target = $region90
        $region89: #{tpu_custom_call.1} parent=85 // pred_region
          %s2331 = sand.u32 %s270, 1
          %s2332 = scalar_lea.sflag [#allocation7], %s2331
          %s2333 = sand.u32 %s270, 1
          %s2334 = scalar_lea.vmem [#allocation6], %s2333
          %2335 = dma.done %s2332, 16
        $region90: #{tpu_custom_call.1} parent=85 // pred_fallthru
          _
      $region86: #{tpu_custom_call.1} parent=5 // pred_fallthru
        _
    $region6: #{tpu_custom_call.1} parent=1 // loop_footer
      %s24 = sadd.s32 1, %s20
    $region7: #{tpu_custom_call.1} parent=1 // loop_footer_branch
      %19 = sbr.rel target = $region3
    $region8: #{tpu_custom_call.1} parent=1 // loop_exit
      _
    %2336 = vsyncpa [#allocation7], 1
    %s2337 = scalar_lea.sflag [#allocation7], 1
    %2338 = vsyncpa %s2337, 1

</llo_original>
